<compile_context>
chip_gen: v7x
topology: tpu7x:2x2x1
jax: 0.10.0
libtpu: 0.0.40
codegen_flags: <defaults>
</compile_context>

<pallas_src>
import functools

import jax
import jax.numpy as jnp
from jax.experimental import pallas as pl
from jax.experimental.pallas import tpu as pltpu


def _round_up(x, m):
    return ((x + m - 1) // m) * m


def _pick_batch_tile(B, block_b):
    """Batch tile: as large as block_b allows (amortize the ~0.35us/step
    pipeline overhead; ~1-4 MB output tiles), but keep >=2 grid steps so the
    'parallel' batch axis can shard across v7x's two TensorCores."""
    if B <= 8:
        return B                                   # full-dim block (exempt from 8-sublane rule)
    tb = min(_round_up(block_b, 8), _round_up(pl.cdiv(B, 2), 8))
    return max(tb, 8)


def actor_kernel(x_ref, w1_ref, w2_ref, wh_ref, b12_ref, hc_ref, out_ref):
    mxu_dt = w1_ref.dtype                          # f32 or bf16 (bias/ReLU/clamp stay f32)
    b12 = b12_ref[...]                             # (2, H): [b1; b2]
    hc = hc_ref[...]                               # (3, Np): [head bias; clamp lo; clamp hi]

    # shared layer 1: Linear + ReLU
    h = jnp.dot(x_ref[...], w1_ref[...], preferred_element_type=jnp.float32)
    h = jnp.maximum(h + b12[0:1, :], 0.0)

    # shared layer 2: Linear + ReLU
    h = jnp.dot(h.astype(mxu_dt), w2_ref[...], preferred_element_type=jnp.float32)
    h = jnp.maximum(h + b12[1:2, :], 0.0)

    # fused heads: columns are [mean (A) | log_std (A) | zero-pad] -> (tb, Np)
    y = jnp.dot(h.astype(mxu_dt), wh_ref[...], preferred_element_type=jnp.float32)
    y = y + hc[0:1, :]
    # per-column clamp: lo/hi are (-inf, +inf) for mean/pad cols, (-20, 2) for log_std cols
    y = jnp.minimum(jnp.maximum(y, hc[1:2, :]), hc[2:3, :])

    out_ref[...] = y.astype(out_ref.dtype)         # lane-dense, unmasked store


def continuous_actor_forward(state, params, action_dim, block_b=2048,
                             out_dtype=jnp.float32, single_buffer_weights=True):
    B, S = state.shape
    w1, w2, wh = params["w1"], params["w2"], params["wh"]
    H = w1.shape[1]                                # padded hidden width
    Np = wh.shape[1]                               # fused head width (multiple of 128)

    tb = _pick_batch_tile(B, block_b)
    grid = (pl.cdiv(B, tb),)                       # ragged last block -> masked writes

    state = state.astype(w1.dtype)                 # match MXU operand dtype (no-op for f32)

    def resident(block_shape):
        # Constant-index blocks stay VMEM-resident across grid steps; single-
        # buffering them avoids doubling their VMEM footprint (matters most on
        # v7x's 64 MiB VMEM at production hidden_dim).
        if single_buffer_weights:
            return pl.BlockSpec(block_shape, lambda i: (0, 0),
                                pipeline_mode=pl.Buffered(1))
        return pl.BlockSpec(block_shape, lambda i: (0, 0))

    cost = pl.CostEstimate(
        flops=2 * B * (S * H + H * H + H * Np),
        transcendentals=0,
        bytes_accessed=(w1.dtype.itemsize * (B * S + S * H + H * H + H * Np)
                        + 4 * (2 * H + 3 * Np)
                        + B * Np * jnp.dtype(out_dtype).itemsize),
    )

    out = pl.pallas_call(
        actor_kernel,
        out_shape=jax.ShapeDtypeStruct((B, Np), out_dtype),
        grid=grid,
        in_specs=[
            pl.BlockSpec((tb, S), lambda i: (i, 0)),   # state tile marches over B
            resident((S, H)),                          # w1
            resident((H, H)),                          # w2
            resident((H, Np)),                         # fused head weight
            resident((2, H)),                          # stacked b1/b2
            resident((3, Np)),                         # head bias + clamp lo/hi
        ],
        out_specs=pl.BlockSpec((tb, Np), lambda i: (i, 0)),
        compiler_params=pltpu.CompilerParams(
            dimension_semantics=("parallel",)),        # v7x: shard batch over 2 TCs
        cost_estimate=cost,
    )(state, w1, w2, wh, params["b12"], params["hc"])

    # one slice of the 128-wide slab, then split (avoids two strided passes)
    heads = out[:, :2 * action_dim]
    return heads[:, :action_dim], heads[:, action_dim:]


def init_params(key, state_dim, action_dim, hidden_dim, *,
                dtype=jnp.float32, pad_hidden_to_lanes=True):
    """PyTorch nn.Linear-style init: U(-1/sqrt(fan_in), 1/sqrt(fan_in)).

    Weights stored [in_features, out_features] (pre-transposed vs torch); the
    mean/log_std heads are fused into one lane-dense [H, 128k] weight; the
    head bias and the per-column clamp lo/hi are stacked into one (3, Np)
    constant; hidden_dim is zero-padded (exact) to a 128-lane multiple.
    Pass dtype=jnp.bfloat16 to store MXU operands in bf16 (production sizes;
    breaks the strict f32 tolerance)."""
    def linear(k, fan_in, fan_out):
        kw, kb = jax.random.split(k)
        bound = 1.0 / jnp.sqrt(float(fan_in))
        w = jax.random.uniform(kw, (fan_in, fan_out), jnp.float32, -bound, bound)
        b = jax.random.uniform(kb, (fan_out,), jnp.float32, -bound, bound)
        return w, b

    k1, k2, k3, k4 = jax.random.split(key, 4)
    w1, b1 = linear(k1, state_dim, hidden_dim)
    w2, b2 = linear(k2, hidden_dim, hidden_dim)
    wm, bm = linear(k3, hidden_dim, action_dim)
    ws, bs = linear(k4, hidden_dim, action_dim)

    Hp = _round_up(hidden_dim, 128) if pad_hidden_to_lanes else hidden_dim
    Np = _round_up(2 * action_dim, 128)
    A = action_dim

    w1p = jnp.zeros((state_dim, Hp), jnp.float32).at[:, :hidden_dim].set(w1)
    w2p = jnp.zeros((Hp, Hp), jnp.float32).at[:hidden_dim, :hidden_dim].set(w2)
    whp = jnp.zeros((Hp, Np), jnp.float32)
    whp = whp.at[:hidden_dim, :A].set(wm).at[:hidden_dim, A:2 * A].set(ws)

    b12 = jnp.zeros((2, Hp), jnp.float32)
    b12 = b12.at[0, :hidden_dim].set(b1).at[1, :hidden_dim].set(b2)

    hc = jnp.zeros((3, Np), jnp.float32)
    hc = hc.at[0, :A].set(bm).at[0, A:2 * A].set(bs)           # fused head bias
    hc = hc.at[1, :].set(-jnp.inf).at[1, A:2 * A].set(-20.0)   # clamp lo
    hc = hc.at[2, :].set(jnp.inf).at[2, A:2 * A].set(2.0)      # clamp hi

    return dict(w1=w1p.astype(dtype), w2=w2p.astype(dtype), wh=whp.astype(dtype),
                b12=b12, hc=hc)


def reference_forward(state, p, action_dim):
    hi = jax.lax.Precision.HIGHEST
    f32 = jnp.float32
    h = jnp.maximum(jnp.dot(state, p["w1"].astype(f32), precision=hi) + p["b12"][0], 0.0)
    h = jnp.maximum(jnp.dot(h, p["w2"].astype(f32), precision=hi) + p["b12"][1], 0.0)
    y = jnp.dot(h, p["wh"].astype(f32), precision=hi) + p["hc"][0]
    y = jnp.clip(y, p["hc"][1], p["hc"][2])
    return y[:, :action_dim], y[:, action_dim:2 * action_dim]


if __name__ == "__main__":
    # small shapes consistent with the module's forward
    batch, state_dim, action_dim, hidden_dim = 16, 16, 4, 32

    key = jax.random.PRNGKey(0)
    k_params, k_state = jax.random.split(key)
    params = init_params(k_params, state_dim, action_dim, hidden_dim)
    state = jax.random.normal(k_state, (batch, state_dim), jnp.float32)

    fwd = jax.jit(continuous_actor_forward,
                  static_argnames=("action_dim", "block_b", "out_dtype"))

    def run(fwd_fn, s):
        m, ls = fwd_fn(s, params, action_dim=action_dim)
        jax.block_until_ready((m, ls))
        return m, ls

    try:
        mean, log_std = run(fwd, state)
    except Exception:
        # TODO(synk): fallback for jax builds that reject pipeline_mode=pl.Buffered(1)
        # on the VMEM-resident weight specs; semantics are identical.
        fwd = jax.jit(functools.partial(continuous_actor_forward,
                                        single_buffer_weights=False),
                      static_argnames=("action_dim", "block_b", "out_dtype"))
        mean, log_std = run(fwd, state)

    # correctness check against a pure-JAX reference
    ref_mean, ref_log_std = reference_forward(state, params, action_dim)
    assert mean.shape == (batch, action_dim)
    assert log_std.shape == (batch, action_dim)
    assert jnp.allclose(mean, ref_mean, atol=2e-5, rtol=2e-5)
    assert jnp.allclose(log_std, ref_log_std, atol=2e-5, rtol=2e-5)
    assert float(log_std.max()) <= 2.0 and float(log_std.min()) >= -20.0

    # ragged batch (B not a multiple of the 8-row tile): exercises the masked
    # last-block write path that replaced the host-side jnp.pad
    b2 = 13
    mean2, log_std2 = run(fwd, state[:b2])
    assert mean2.shape == (b2, action_dim) and log_std2.shape == (b2, action_dim)
    assert jnp.allclose(mean2, ref_mean[:b2], atol=2e-5, rtol=2e-5)
    assert jnp.allclose(log_std2, ref_log_std[:b2], atol=2e-5, rtol=2e-5)

    print("KERNEL_OK")
</pallas_src>

<mosaic_0001>
module attributes {stable_mosaic.version = 11 : i64} {
  func.func @actor_kernel(%arg0: i32, %arg1: memref<8x16xf32, #tpu.memory_space<vmem>>, %arg2: memref<16x128xf32, #tpu.memory_space<vmem>>, %arg3: memref<128x128xf32, #tpu.memory_space<vmem>>, %arg4: memref<128x128xf32, #tpu.memory_space<vmem>>, %arg5: memref<2x128xf32, #tpu.memory_space<vmem>>, %arg6: memref<3x128xf32, #tpu.memory_space<vmem>>, %arg7: memref<8x128xf32, #tpu.memory_space<vmem>>) attributes {dimension_semantics = [#tpu.dimension_semantics<parallel>], iteration_bounds = array<i64: 2>, scalar_prefetch = 0 : i64, scratch_operands = 0 : i64, tpu.core_type = #tpu.core_type<tc>, window_params = [{transform_indices = @transform_0, window_bounds = array<i64: 8, 16>}, {pipeline_mode = #tpu.pipeline_mode<synchronous>, transform_indices = @transform_1, window_bounds = array<i64: 16, 128>}, {pipeline_mode = #tpu.pipeline_mode<synchronous>, transform_indices = @transform_2, window_bounds = array<i64: 128, 128>}, {pipeline_mode = #tpu.pipeline_mode<synchronous>, transform_indices = @transform_3, window_bounds = array<i64: 128, 128>}, {pipeline_mode = #tpu.pipeline_mode<synchronous>, transform_indices = @transform_4, window_bounds = array<i64: 2, 128>}, {pipeline_mode = #tpu.pipeline_mode<synchronous>, transform_indices = @transform_5, window_bounds = array<i64: 3, 128>}, {transform_indices = @transform_6, window_bounds = array<i64: 8, 128>}]} {
    %c0 = arith.constant 0 : index
    %c0_0 = arith.constant 0 : index
    %0 = vector.load %arg5[%c0, %c0_0] : memref<2x128xf32, #tpu.memory_space<vmem>>, vector<2x128xf32>
    %c0_1 = arith.constant 0 : index
    %c0_2 = arith.constant 0 : index
    %1 = vector.load %arg6[%c0_1, %c0_2] : memref<3x128xf32, #tpu.memory_space<vmem>>, vector<3x128xf32>
    %c0_3 = arith.constant 0 : index
    %c0_4 = arith.constant 0 : index
    %2 = vector.load %arg1[%c0_3, %c0_4] : memref<8x16xf32, #tpu.memory_space<vmem>>, vector<8x16xf32>
    %c0_5 = arith.constant 0 : index
    %c0_6 = arith.constant 0 : index
    %3 = vector.load %arg2[%c0_5, %c0_6] : memref<16x128xf32, #tpu.memory_space<vmem>>, vector<16x128xf32>
    %cst = arith.constant dense<0.000000e+00> : vector<8x128xf32>
    %4 = tpu.matmul %2, %3, %cst {dimension_numbers = #tpu.dot_dimension_numbers<[1], [0], [0], [1], [0, 0, 1, 1], [], []>} : vector<8x16xf32>, vector<16x128xf32>, vector<8x128xf32> -> vector<8x128xf32>
    %5 = vector.extract_strided_slice %0 {offsets = [0, 0], sizes = [1, 128], strides = [1, 1]} : vector<2x128xf32> to vector<1x128xf32>
    %6 = vector.broadcast %5 : vector<1x128xf32> to vector<8x128xf32>
    %7 = arith.addf %4, %6 : vector<8x128xf32>
    %cst_7 = arith.constant 0.000000e+00 : f32
    %8 = vector.broadcast %cst_7 : f32 to vector<8x128xf32>
    %9 = arith.maximumf %7, %8 : vector<8x128xf32>
    %c0_8 = arith.constant 0 : index
    %c0_9 = arith.constant 0 : index
    %10 = vector.load %arg3[%c0_8, %c0_9] : memref<128x128xf32, #tpu.memory_space<vmem>>, vector<128x128xf32>
    %cst_10 = arith.constant dense<0.000000e+00> : vector<8x128xf32>
    %11 = tpu.matmul %9, %10, %cst_10 {dimension_numbers = #tpu.dot_dimension_numbers<[1], [0], [0], [1], [0, 0, 1, 1], [], []>} : vector<8x128xf32>, vector<128x128xf32>, vector<8x128xf32> -> vector<8x128xf32>
    %12 = vector.extract_strided_slice %0 {offsets = [1, 0], sizes = [1, 128], strides = [1, 1]} : vector<2x128xf32> to vector<1x128xf32>
    %13 = vector.broadcast %12 : vector<1x128xf32> to vector<8x128xf32>
    %14 = arith.addf %11, %13 : vector<8x128xf32>
    %cst_11 = arith.constant 0.000000e+00 : f32
    %15 = vector.broadcast %cst_11 : f32 to vector<8x128xf32>
    %16 = arith.maximumf %14, %15 : vector<8x128xf32>
    %c0_12 = arith.constant 0 : index
    %c0_13 = arith.constant 0 : index
    %17 = vector.load %arg4[%c0_12, %c0_13] : memref<128x128xf32, #tpu.memory_space<vmem>>, vector<128x128xf32>
    %cst_14 = arith.constant dense<0.000000e+00> : vector<8x128xf32>
    %18 = tpu.matmul %16, %17, %cst_14 {dimension_numbers = #tpu.dot_dimension_numbers<[1], [0], [0], [1], [0, 0, 1, 1], [], []>} : vector<8x128xf32>, vector<128x128xf32>, vector<8x128xf32> -> vector<8x128xf32>
    %19 = vector.extract_strided_slice %1 {offsets = [0, 0], sizes = [1, 128], strides = [1, 1]} : vector<3x128xf32> to vector<1x128xf32>
    %20 = vector.broadcast %19 : vector<1x128xf32> to vector<8x128xf32>
    %21 = arith.addf %18, %20 : vector<8x128xf32>
    %22 = vector.extract_strided_slice %1 {offsets = [1, 0], sizes = [1, 128], strides = [1, 1]} : vector<3x128xf32> to vector<1x128xf32>
    %23 = vector.broadcast %22 : vector<1x128xf32> to vector<8x128xf32>
    %24 = arith.maximumf %21, %23 : vector<8x128xf32>
    %25 = vector.extract_strided_slice %1 {offsets = [2, 0], sizes = [1, 128], strides = [1, 1]} : vector<3x128xf32> to vector<1x128xf32>
    %26 = vector.broadcast %25 : vector<1x128xf32> to vector<8x128xf32>
    %27 = arith.minimumf %24, %26 : vector<8x128xf32>
    %c0_15 = arith.constant 0 : index
    %c0_16 = arith.constant 0 : index
    %28 = vector.load %arg7[%c0_15, %c0_16] : memref<8x128xf32, #tpu.memory_space<vmem>>, vector<8x128xf32>
    tpu.vector_store %arg7[%c0_15, %c0_16], %27 {strides = array<i32>} : memref<8x128xf32, #tpu.memory_space<vmem>>, vector<8x128xf32>,
    return
  }
  func.func @transform_0(%arg0: i32) -> (i32, i32) {
    %c0_i32 = arith.constant 0 : i32
    %c0_i32_0 = arith.constant 0 : i32
    return %arg0, %c0_i32 : i32, i32
  }
  func.func @transform_1(%arg0: i32) -> (i32, i32) {
    %c0_i32 = arith.constant 0 : i32
    %c0_i32_0 = arith.constant 0 : i32
    %c0_i32_1 = arith.constant 0 : i32
    return %c0_i32, %c0_i32_0 : i32, i32
  }
  func.func @transform_2(%arg0: i32) -> (i32, i32) {
    %c0_i32 = arith.constant 0 : i32
    %c0_i32_0 = arith.constant 0 : i32
    %c0_i32_1 = arith.constant 0 : i32
    return %c0_i32, %c0_i32_0 : i32, i32
  }
  func.func @transform_3(%arg0: i32) -> (i32, i32) {
    %c0_i32 = arith.constant 0 : i32
    %c0_i32_0 = arith.constant 0 : i32
    %c0_i32_1 = arith.constant 0 : i32
    return %c0_i32, %c0_i32_0 : i32, i32
  }
  func.func @transform_4(%arg0: i32) -> (i32, i32) {
    %c0_i32 = arith.constant 0 : i32
    %c0_i32_0 = arith.constant 0 : i32
    %c0_i32_1 = arith.constant 0 : i32
    return %c0_i32, %c0_i32_0 : i32, i32
  }
  func.func @transform_5(%arg0: i32) -> (i32, i32) {
    %c0_i32 = arith.constant 0 : i32
    %c0_i32_0 = arith.constant 0 : i32
    %c0_i32_1 = arith.constant 0 : i32
    return %c0_i32, %c0_i32_0 : i32, i32
  }
  func.func @transform_6(%arg0: i32) -> (i32, i32) {
    %c0_i32 = arith.constant 0 : i32
    %c0_i32_0 = arith.constant 0 : i32
    return %arg0, %c0_i32 : i32, i32
  }
}

module attributes {stable_mosaic.version = 11 : i64} {
  func.func @actor_kernel(%arg0: i32, %arg1: memref<8x16xf32, #tpu.memory_space<vmem>>, %arg2: memref<16x128xf32, #tpu.memory_space<vmem>>, %arg3: memref<128x128xf32, #tpu.memory_space<vmem>>, %arg4: memref<128x128xf32, #tpu.memory_space<vmem>>, %arg5: memref<2x128xf32, #tpu.memory_space<vmem>>, %arg6: memref<3x128xf32, #tpu.memory_space<vmem>>, %arg7: memref<8x128xf32, #tpu.memory_space<vmem>>) attributes {dimension_semantics = [#tpu.dimension_semantics<parallel>], iteration_bounds = array<i64: 2>, scalar_prefetch = 0 : i64, scratch_operands = 0 : i64, tpu.core_type = #tpu.core_type<tc>, window_params = [{transform_indices = @transform_0, window_bounds = array<i64: 8, 16>}, {pipeline_mode = #tpu.pipeline_mode<synchronous>, transform_indices = @transform_1, window_bounds = array<i64: 16, 128>}, {pipeline_mode = #tpu.pipeline_mode<synchronous>, transform_indices = @transform_2, window_bounds = array<i64: 128, 128>}, {pipeline_mode = #tpu.pipeline_mode<synchronous>, transform_indices = @transform_3, window_bounds = array<i64: 128, 128>}, {pipeline_mode = #tpu.pipeline_mode<synchronous>, transform_indices = @transform_4, window_bounds = array<i64: 2, 128>}, {pipeline_mode = #tpu.pipeline_mode<synchronous>, transform_indices = @transform_5, window_bounds = array<i64: 3, 128>}, {transform_indices = @transform_6, window_bounds = array<i64: 8, 128>}]} {
    %c0 = arith.constant 0 : index
    %c0_0 = arith.constant 0 : index
    %0 = vector.load %arg5[%c0, %c0_0] : memref<2x128xf32, #tpu.memory_space<vmem>>, vector<2x128xf32>
    %c0_1 = arith.constant 0 : index
    %c0_2 = arith.constant 0 : index
    %1 = vector.load %arg6[%c0_1, %c0_2] : memref<3x128xf32, #tpu.memory_space<vmem>>, vector<3x128xf32>
    %c0_3 = arith.constant 0 : index
    %c0_4 = arith.constant 0 : index
    %2 = vector.load %arg1[%c0_3, %c0_4] : memref<8x16xf32, #tpu.memory_space<vmem>>, vector<8x16xf32>
    %c0_5 = arith.constant 0 : index
    %c0_6 = arith.constant 0 : index
    %3 = vector.load %arg2[%c0_5, %c0_6] : memref<16x128xf32, #tpu.memory_space<vmem>>, vector<16x128xf32>
    %cst = arith.constant dense<0.000000e+00> : vector<8x128xf32>
    %4 = tpu.matmul %2, %3, %cst {dimension_numbers = #tpu.dot_dimension_numbers<[1], [0], [0], [1], [0, 0, 1, 1], [], []>} : vector<8x16xf32>, vector<16x128xf32>, vector<8x128xf32> -> vector<8x128xf32>
    %5 = vector.extract_strided_slice %0 {offsets = [0, 0], sizes = [1, 128], strides = [1, 1]} : vector<2x128xf32> to vector<1x128xf32>
    %6 = vector.broadcast %5 : vector<1x128xf32> to vector<8x128xf32>
    %7 = arith.addf %4, %6 : vector<8x128xf32>
    %cst_7 = arith.constant 0.000000e+00 : f32
    %8 = vector.broadcast %cst_7 : f32 to vector<8x128xf32>
    %9 = arith.maximumf %7, %8 : vector<8x128xf32>
    %c0_8 = arith.constant 0 : index
    %c0_9 = arith.constant 0 : index
    %10 = vector.load %arg3[%c0_8, %c0_9] : memref<128x128xf32, #tpu.memory_space<vmem>>, vector<128x128xf32>
    %cst_10 = arith.constant dense<0.000000e+00> : vector<8x128xf32>
    %11 = tpu.matmul %9, %10, %cst_10 {dimension_numbers = #tpu.dot_dimension_numbers<[1], [0], [0], [1], [0, 0, 1, 1], [], []>} : vector<8x128xf32>, vector<128x128xf32>, vector<8x128xf32> -> vector<8x128xf32>
    %12 = vector.extract_strided_slice %0 {offsets = [1, 0], sizes = [1, 128], strides = [1, 1]} : vector<2x128xf32> to vector<1x128xf32>
    %13 = vector.broadcast %12 : vector<1x128xf32> to vector<8x128xf32>
    %14 = arith.addf %11, %13 : vector<8x128xf32>
    %cst_11 = arith.constant 0.000000e+00 : f32
    %15 = vector.broadcast %cst_11 : f32 to vector<8x128xf32>
    %16 = arith.maximumf %14, %15 : vector<8x128xf32>
    %c0_12 = arith.constant 0 : index
    %c0_13 = arith.constant 0 : index
    %17 = vector.load %arg4[%c0_12, %c0_13] : memref<128x128xf32, #tpu.memory_space<vmem>>, vector<128x128xf32>
    %cst_14 = arith.constant dense<0.000000e+00> : vector<8x128xf32>
    %18 = tpu.matmul %16, %17, %cst_14 {dimension_numbers = #tpu.dot_dimension_numbers<[1], [0], [0], [1], [0, 0, 1, 1], [], []>} : vector<8x128xf32>, vector<128x128xf32>, vector<8x128xf32> -> vector<8x128xf32>
    %19 = vector.extract_strided_slice %1 {offsets = [0, 0], sizes = [1, 128], strides = [1, 1]} : vector<3x128xf32> to vector<1x128xf32>
    %20 = vector.broadcast %19 : vector<1x128xf32> to vector<8x128xf32>
    %21 = arith.addf %18, %20 : vector<8x128xf32>
    %22 = vector.extract_strided_slice %1 {offsets = [1, 0], sizes = [1, 128], strides = [1, 1]} : vector<3x128xf32> to vector<1x128xf32>
    %23 = vector.broadcast %22 : vector<1x128xf32> to vector<8x128xf32>
    %24 = arith.maximumf %21, %23 : vector<8x128xf32>
    %25 = vector.extract_strided_slice %1 {offsets = [2, 0], sizes = [1, 128], strides = [1, 1]} : vector<3x128xf32> to vector<1x128xf32>
    %26 = vector.broadcast %25 : vector<1x128xf32> to vector<8x128xf32>
    %27 = arith.minimumf %24, %26 : vector<8x128xf32>
    %c0_15 = arith.constant 0 : index
    %c0_16 = arith.constant 0 : index
    %28 = vector.load %arg7[%c0_15, %c0_16] : memref<8x128xf32, #tpu.memory_space<vmem>>, vector<8x128xf32>
    tpu.vector_store %arg7[%c0_15, %c0_16], %27 {strides = array<i32>} : memref<8x128xf32, #tpu.memory_space<vmem>>, vector<8x128xf32>,
    return
  }
  func.func @transform_0(%arg0: i32) -> (i32, i32) {
    %c0_i32 = arith.constant 0 : i32
    %c0_i32_0 = arith.constant 0 : i32
    return %arg0, %c0_i32 : i32, i32
  }
  func.func @transform_1(%arg0: i32) -> (i32, i32) {
    %c0_i32 = arith.constant 0 : i32
    %c0_i32_0 = arith.constant 0 : i32
    %c0_i32_1 = arith.constant 0 : i32
    return %c0_i32, %c0_i32_0 : i32, i32
  }
  func.func @transform_2(%arg0: i32) -> (i32, i32) {
    %c0_i32 = arith.constant 0 : i32
    %c0_i32_0 = arith.constant 0 : i32
    %c0_i32_1 = arith.constant 0 : i32
    return %c0_i32, %c0_i32_0 : i32, i32
  }
  func.func @transform_3(%arg0: i32) -> (i32, i32) {
    %c0_i32 = arith.constant 0 : i32
    %c0_i32_0 = arith.constant 0 : i32
    %c0_i32_1 = arith.constant 0 : i32
    return %c0_i32, %c0_i32_0 : i32, i32
  }
  func.func @transform_4(%arg0: i32) -> (i32, i32) {
    %c0_i32 = arith.constant 0 : i32
    %c0_i32_0 = arith.constant 0 : i32
    %c0_i32_1 = arith.constant 0 : i32
    return %c0_i32, %c0_i32_0 : i32, i32
  }
  func.func @transform_5(%arg0: i32) -> (i32, i32) {
    %c0_i32 = arith.constant 0 : i32
    %c0_i32_0 = arith.constant 0 : i32
    %c0_i32_1 = arith.constant 0 : i32
    return %c0_i32, %c0_i32_0 : i32, i32
  }
  func.func @transform_6(%arg0: i32) -> (i32, i32) {
    %c0_i32 = arith.constant 0 : i32
    %c0_i32_0 = arith.constant 0 : i32
    return %arg0, %c0_i32 : i32, i32
  }
}

</mosaic_0001>

<llo_original>
// kernel: continuous_actor_forward.1
$region0: #{continuous_actor_forward.1}
  #allocation0 [shape = 'u32[]', space=smem, size = 0x4, offset = 0x4, fixed_abs, tag = 'smem constant byte address 0x4 - core index']
  #allocation1 [shape = 'u32[144,128]{1,0:T(1,128)}', space=vmem, size = 0x12000, scoped, tag = 'internal scratch']
  %s0 = inlined_call_operand.hbm [shape: f32[16,16], index: 0, kind: input, shape index: {}]
  %s1 = inlined_call_operand.hbm [shape: f32[16,128], index: 1, kind: input, shape index: {}]
  %s2 = inlined_call_operand.hbm [shape: f32[128,128], index: 2, kind: input, shape index: {}]
  %s3 = inlined_call_operand.hbm [shape: f32[128,128], index: 3, kind: input, shape index: {}]
  %s4 = inlined_call_operand.vmem [shape: f32[2,128], index: 4, kind: input, shape index: {}]
  %s5 = inlined_call_operand.vmem [shape: f32[3,128], index: 5, kind: input, shape index: {}]
  %s6 = inlined_call_operand.vmem [shape: f32[16,128], index: 6, kind: output, shape index: {}]
  %s7 = sld [smem:[#allocation0]]
  $region73: #{continuous_actor_forward.1} parent=0
    _
  %s9 = ssub.s32 1, %s7
  %s10 = scalar_select 0, %s9, %s7
  $region1: #{continuous_actor_forward.1} parent=0
    #allocation2 [shape = 'u8[8192]{0}', space=vmem, size = 0x2000, scoped, tag = 'input window, operand 0']
    #allocation3 [shape = 's32[2]{0}', space=sflag, size = 0x8, scoped, tag = 'scoped memory for continuous_actor_forward.1']
    #allocation4 [shape = 'u8[8192]{0}', space=vmem, size = 0x2000, scoped, tag = 'input window, operand 1, single buffered']
    #allocation5 [shape = 's32[1]{0}', space=sflag, size = 0x4, scoped, tag = 'scoped memory for continuous_actor_forward.1']
    #allocation6 [shape = 'u8[65536]{0}', space=vmem, size = 0x10000, scoped, tag = 'input window, operand 2, single buffered']
    #allocation7 [shape = 'u8[65536]{0}', space=vmem, size = 0x10000, scoped, tag = 'input window, operand 3, single buffered']
    #allocation8 [shape = 's32[1]{0}', space=sflag, size = 0x4, scoped, tag = 'scoped memory for continuous_actor_forward.1']
    %11 = vsyncpa [#allocation3], 0
    %s12 = scalar_lea.sflag [#allocation3], 1
    %13 = vsyncpa %s12, 0
    %14 = vsyncpa [#allocation5], 0
    %15 = vsyncpa [#allocation8], 0
    loop: start=0, step=1, limit=4
    $region2: #{continuous_actor_forward.1} parent=1 // loop_pre_header
      _
    $region3: #{continuous_actor_forward.1} parent=1 // loop_header
      %s17 = sphi 0, %s21
      %p18 = scmp.ge.s32.totalorder %s17, 4
      %s27 = sphi 0, %s29
      %s30 = sphi 0, %s27
      %s31 = sphi 0, %s30
      %s47 = sphi 0, %s31
      %s51 = sphi 0, %s51
      %s53 = sphi 0, %s51
      %s54 = sphi 0, %s53
      %s68 = sphi 0, %s54
      %s72 = sphi 0, %s72
      %s74 = sphi 0, %s72
      %s75 = sphi 0, %s74
      %s89 = sphi 0, %s75
      %s93 = sphi 0, %s93
      %s95 = sphi 0, %s93
      %s96 = sphi 0, %s95
      %s110 = sphi 0, %s96
      %s114 = sphi 0, %s114
      %s116 = sphi 0, %s114
      %s117 = sphi 0, %s116
      %s131 = sphi 0, %s117
      %s135 = sphi 0, %s135
      %s137 = sphi 0, %s135
      %s138 = sphi 0, %s137
      %s152 = sphi 0, %s138
      %s158 = sphi 0, %s160
      %s161 = sphi 0, %s158
      %s162 = sphi 0, %s161
      %s178 = sphi 0, %s162
    $region4: #{continuous_actor_forward.1} parent=1 // loop_header_branch
      %20 = sbr.rel (%p18) target = $region8
    $region5: #{continuous_actor_forward.1} parent=1 // loop_body
      %s22 = ssub.s32 %s17, 1
      %s23 = ssub.s32 %s17, 2
      %s24 = sadd.s32 %s17, 1
      %s25 = ssub.s32 %s17, %s24
      %p26 = scmp.eq.s32.totalorder %s25, 0
      %s28 = sadd.s32 %s27, 1
      %s29 = scalar_select %p26, %s27, %s28
      %p32 = pneg %p26
      %p33 = scmp.eq.s32.totalorder %s17, 1
      %p34 = por %p32, %p33
      %p35 = scmp.ne.s32.totalorder %s27, %s30
      %p36 = scmp.eq.s32.totalorder %s17, 0
      %p37 = por %p35, %p36
      %p38 = scmp.ne.s32.totalorder %s27, %s30
      %p39 = scmp.eq.s32.totalorder %s22, 1
      %p40 = por %p38, %p39
      %p41 = scmp.ne.s32.totalorder %s30, %s31
      %p42 = scmp.eq.s32.totalorder %s22, 0
      %p43 = por %p41, %p42
      %p44 = scmp.ne.s32.totalorder %s30, %s31
      %p45 = scmp.eq.s32.totalorder %s23, 1
      %p46 = por %p44, %p45
      %p48 = scmp.ne.s32.totalorder %s31, %s47
      %p49 = scmp.eq.s32.totalorder %s23, 0
      %p50 = por %p48, %p49
      %s52 = sadd.s32 %s51, 1
      %p55 = scmp.eq.s32.totalorder %s17, 1
      %p56 = scmp.ne.s32.totalorder %s51, %s53
      %p57 = scmp.eq.s32.totalorder %s17, 0
      %p58 = por %p56, %p57
      %p59 = scmp.ne.s32.totalorder %s51, %s53
      %p60 = scmp.eq.s32.totalorder %s22, 1
      %p61 = por %p59, %p60
      %p62 = scmp.ne.s32.totalorder %s53, %s54
      %p63 = scmp.eq.s32.totalorder %s22, 0
      %p64 = por %p62, %p63
      %p65 = scmp.ne.s32.totalorder %s53, %s54
      %p66 = scmp.eq.s32.totalorder %s23, 1
      %p67 = por %p65, %p66
      %p69 = scmp.ne.s32.totalorder %s54, %s68
      %p70 = scmp.eq.s32.totalorder %s23, 0
      %p71 = por %p69, %p70
      %s73 = sadd.s32 %s72, 1
      %p76 = scmp.eq.s32.totalorder %s17, 1
      %p77 = scmp.ne.s32.totalorder %s72, %s74
      %p78 = scmp.eq.s32.totalorder %s17, 0
      %p79 = por %p77, %p78
      %p80 = scmp.ne.s32.totalorder %s72, %s74
      %p81 = scmp.eq.s32.totalorder %s22, 1
      %p82 = por %p80, %p81
      %p83 = scmp.ne.s32.totalorder %s74, %s75
      %p84 = scmp.eq.s32.totalorder %s22, 0
      %p85 = por %p83, %p84
      %p86 = scmp.ne.s32.totalorder %s74, %s75
      %p87 = scmp.eq.s32.totalorder %s23, 1
      %p88 = por %p86, %p87
      %p90 = scmp.ne.s32.totalorder %s75, %s89
      %p91 = scmp.eq.s32.totalorder %s23, 0
      %p92 = por %p90, %p91
      %s94 = sadd.s32 %s93, 1
      %p97 = scmp.eq.s32.totalorder %s17, 1
      %p98 = scmp.ne.s32.totalorder %s93, %s95
      %p99 = scmp.eq.s32.totalorder %s17, 0
      %p100 = por %p98, %p99
      %p101 = scmp.ne.s32.totalorder %s93, %s95
      %p102 = scmp.eq.s32.totalorder %s22, 1
      %p103 = por %p101, %p102
      %p104 = scmp.ne.s32.totalorder %s95, %s96
      %p105 = scmp.eq.s32.totalorder %s22, 0
      %p106 = por %p104, %p105
      %p107 = scmp.ne.s32.totalorder %s95, %s96
      %p108 = scmp.eq.s32.totalorder %s23, 1
      %p109 = por %p107, %p108
      %p111 = scmp.ne.s32.totalorder %s96, %s110
      %p112 = scmp.eq.s32.totalorder %s23, 0
      %p113 = por %p111, %p112
      %s115 = sadd.s32 %s114, 1
      %p118 = scmp.eq.s32.totalorder %s17, 1
      %p119 = scmp.ne.s32.totalorder %s114, %s116
      %p120 = scmp.eq.s32.totalorder %s17, 0
      %p121 = por %p119, %p120
      %p122 = scmp.ne.s32.totalorder %s114, %s116
      %p123 = scmp.eq.s32.totalorder %s22, 1
      %p124 = por %p122, %p123
      %p125 = scmp.ne.s32.totalorder %s116, %s117
      %p126 = scmp.eq.s32.totalorder %s22, 0
      %p127 = por %p125, %p126
      %p128 = scmp.ne.s32.totalorder %s116, %s117
      %p129 = scmp.eq.s32.totalorder %s23, 1
      %p130 = por %p128, %p129
      %p132 = scmp.ne.s32.totalorder %s117, %s131
      %p133 = scmp.eq.s32.totalorder %s23, 0
      %p134 = por %p132, %p133
      %s136 = sadd.s32 %s135, 1
      %p139 = scmp.eq.s32.totalorder %s17, 1
      %p140 = scmp.ne.s32.totalorder %s135, %s137
      %p141 = scmp.eq.s32.totalorder %s17, 0
      %p142 = por %p140, %p141
      %p143 = scmp.ne.s32.totalorder %s135, %s137
      %p144 = scmp.eq.s32.totalorder %s22, 1
      %p145 = por %p143, %p144
      %p146 = scmp.ne.s32.totalorder %s137, %s138
      %p147 = scmp.eq.s32.totalorder %s22, 0
      %p148 = por %p146, %p147
      %p149 = scmp.ne.s32.totalorder %s137, %s138
      %p150 = scmp.eq.s32.totalorder %s23, 1
      %p151 = por %p149, %p150
      %p153 = scmp.ne.s32.totalorder %s138, %s152
      %p154 = scmp.eq.s32.totalorder %s23, 0
      %p155 = por %p153, %p154
      %s156 = ssub.s32 %s17, %s24
      %p157 = scmp.eq.s32.totalorder %s156, 0
      %s159 = sadd.s32 %s158, 1
      %s160 = scalar_select %p157, %s158, %s159
      %p163 = pneg %p157
      %p164 = scmp.eq.s32.totalorder %s17, 1
      %p165 = por %p163, %p164
      %p166 = scmp.ne.s32.totalorder %s158, %s161
      %p167 = scmp.eq.s32.totalorder %s17, 0
      %p168 = por %p166, %p167
      %p169 = scmp.ne.s32.totalorder %s158, %s161
      %p170 = scmp.eq.s32.totalorder %s22, 1
      %p171 = por %p169, %p170
      %p172 = scmp.ne.s32.totalorder %s161, %s162
      %p173 = scmp.eq.s32.totalorder %s22, 0
      %p174 = por %p172, %p173
      %p175 = scmp.ne.s32.totalorder %s161, %s162
      %p176 = scmp.eq.s32.totalorder %s23, 1
      %p177 = por %p175, %p176
      %p179 = scmp.ne.s32.totalorder %s162, %s178
      %p180 = scmp.eq.s32.totalorder %s23, 0
      %p181 = por %p179, %p180
      %p182 = scmp.le.s32.totalorder 1, %s17
      %p183 = scmp.lt.s32.totalorder %s17, 3
      %p184 = pnand %p182, %p183
      %p185 = pneg %p184
      // Predicated region
      $region9: #{continuous_actor_forward.1} parent=5 // pred_check
        _
      $region10: #{continuous_actor_forward.1} parent=5 // pred_check_branch
        %187 = sbr.rel (%p184) target = $region12
      $region11: #{continuous_actor_forward.1} parent=5 // pred_region
        %s188 = ssub.s32 %s17, 1
        // Predicated region
        $region13: #{continuous_actor_forward.1} parent=11 // pred_check
          %p189 = pneg %p64
        $region14: #{continuous_actor_forward.1} parent=11 // pred_check_branch
          %191 = sbr.rel (%p189) target = $region16
        $region15: #{continuous_actor_forward.1} parent=11 // pred_region
          %s193 = ssub.s32 256, 256
          %194 = vsyncadd [#allocation5], %s193
          %s195 = sshll.u32 [#allocation4], 4
          %s196 = int_to_ptr.vmem [resolvable:$true] %s195
          %201 = dma.hbm_to_vmem [thread:$0]  %s1, 256, %s196, [#allocation5], 128, 128, 8
        $region16: #{continuous_actor_forward.1} parent=11 // pred_fallthru
          _
        // Predicated region
        $region17: #{continuous_actor_forward.1} parent=11 // pred_check
          %p202 = pneg %p85
        $region18: #{continuous_actor_forward.1} parent=11 // pred_check_branch
          %204 = sbr.rel (%p202) target = $region20
        $region19: #{continuous_actor_forward.1} parent=11 // pred_region
          %s206 = ssub.s32 2048, 2048
          %207 = vsyncadd [#allocation5], %s206
          %s208 = sshll.u32 [#allocation6], 4
          %s209 = int_to_ptr.vmem [resolvable:$true] %s208
          %214 = dma.hbm_to_vmem [thread:$0]  %s2, 2048, %s209, [#allocation5], 128, 128, 8
        $region20: #{continuous_actor_forward.1} parent=11 // pred_fallthru
          _
        // Predicated region
        $region21: #{continuous_actor_forward.1} parent=11 // pred_check
          %p215 = pneg %p106
        $region22: #{continuous_actor_forward.1} parent=11 // pred_check_branch
          %217 = sbr.rel (%p215) target = $region24
        $region23: #{continuous_actor_forward.1} parent=11 // pred_region
          %s219 = ssub.s32 2048, 2048
          %220 = vsyncadd [#allocation8], %s219
          %s221 = sshll.u32 [#allocation7], 4
          %s222 = int_to_ptr.vmem [resolvable:$true] %s221
          %227 = dma.hbm_to_vmem [thread:$0]  %s3, 2048, %s222, [#allocation8], 128, 128, 8
        $region24: #{continuous_actor_forward.1} parent=11 // pred_fallthru
          _
        // Predicated region
        $region25: #{continuous_actor_forward.1} parent=11 // pred_check
          %p228 = pneg %p127
        $region26: #{continuous_actor_forward.1} parent=11 // pred_check_branch
          %230 = sbr.rel (%p228) target = $region28
        $region27: #{continuous_actor_forward.1} parent=11 // pred_region
          _
        $region28: #{continuous_actor_forward.1} parent=11 // pred_fallthru
          _
        // Predicated region
        $region29: #{continuous_actor_forward.1} parent=11 // pred_check
          %p231 = pneg %p148
        $region30: #{continuous_actor_forward.1} parent=11 // pred_check_branch
          %233 = sbr.rel (%p231) target = $region32
        $region31: #{continuous_actor_forward.1} parent=11 // pred_region
          _
        $region32: #{continuous_actor_forward.1} parent=11 // pred_fallthru
          _
      $region12: #{continuous_actor_forward.1} parent=5 // pred_fallthru
        _
      %p234 = scmp.lt.s32.totalorder %s17, 2
      // Predicated region
      $region33: #{continuous_actor_forward.1} parent=5 // pred_check
        %p235 = pneg %p234
      $region34: #{continuous_actor_forward.1} parent=5 // pred_check_branch
        %237 = sbr.rel (%p235) target = $region36
      $region35: #{continuous_actor_forward.1} parent=5 // pred_region
        // Predicated region
        $region37: #{continuous_actor_forward.1} parent=35 // pred_check
          %p238 = pneg %p37
        $region38: #{continuous_actor_forward.1} parent=35 // pred_check_branch
          %240 = sbr.rel (%p238) target = $region40
        $region39: #{continuous_actor_forward.1} parent=35 // pred_region
          %s241 = sand.u32 %s27, 1
          %s242 = scalar_lea.sflag [#allocation3], %s241
          %s243 = sand.u32 %s27, 1
          %s244 = smul.addr %s243, 8
          %s245 = scalar_lea.vmem [#allocation2], %s244
          %s247 = ssub.s32 128, 128
          %248 = vsyncadd %s242, %s247
          %s249 = smul.addr %s17, 128
          %s250 = scalar_lea.hbm %s0, %s249
          %s252 = sshll.u32 %s245, 4
          %s253 = int_to_ptr.vmem [resolvable:$true] %s252
          %255 = dma.hbm_to_vmem [thread:$0]  %s250, 128, %s253, %s242
        $region40: #{continuous_actor_forward.1} parent=35 // pred_fallthru
          _
      $region36: #{continuous_actor_forward.1} parent=5 // pred_fallthru
        _
      %p256 = scmp.le.s32.totalorder 1, %s17
      %p257 = scmp.lt.s32.totalorder %s17, 3
      %p258 = pnand %p256, %p257
      %p259 = pneg %p258
      // Predicated region
      $region41: #{continuous_actor_forward.1} parent=5 // pred_check
        _
      $region42: #{continuous_actor_forward.1} parent=5 // pred_check_branch
        %261 = sbr.rel (%p258) target = $region44
      $region43: #{continuous_actor_forward.1} parent=5 // pred_region
        %s262 = ssub.s32 %s17, 1
        %s263 = sand.u32 %s30, 1
        %s264 = scalar_lea.sflag [#allocation3], %s263
        %s265 = sand.u32 %s30, 1
        %s266 = smul.addr %s265, 8
        %s267 = scalar_lea.vmem [#allocation2], %s266
        // Predicated region
        $region45: #{continuous_actor_forward.1} parent=43 // pred_check
          %p268 = pneg %p43
        $region46: #{continuous_actor_forward.1} parent=43 // pred_check_branch
          %270 = sbr.rel (%p268) target = $region48
        $region47: #{continuous_actor_forward.1} parent=43 // pred_region
          %271 = dma.done %s264, 128
        $region48: #{continuous_actor_forward.1} parent=43 // pred_fallthru
          _
        // Predicated region
        $region49: #{continuous_actor_forward.1} parent=43 // pred_check
          %p272 = pneg %p64
        $region50: #{continuous_actor_forward.1} parent=43 // pred_check_branch
          %274 = sbr.rel (%p272) target = $region52
        $region51: #{continuous_actor_forward.1} parent=43 // pred_region
          %275 = dma.done [#allocation5], 256
        $region52: #{continuous_actor_forward.1} parent=43 // pred_fallthru
          _
        // Predicated region
        $region53: #{continuous_actor_forward.1} parent=43 // pred_check
          %p276 = pneg %p85
        $region54: #{continuous_actor_forward.1} parent=43 // pred_check_branch
          %278 = sbr.rel (%p276) target = $region56
        $region55: #{continuous_actor_forward.1} parent=43 // pred_region
          %279 = dma.done [#allocation5], 2048
        $region56: #{continuous_actor_forward.1} parent=43 // pred_fallthru
          _
        // Predicated region
        $region57: #{continuous_actor_forward.1} parent=43 // pred_check
          %p280 = pneg %p106
        $region58: #{continuous_actor_forward.1} parent=43 // pred_check_branch
          %282 = sbr.rel (%p280) target = $region60
        $region59: #{continuous_actor_forward.1} parent=43 // pred_region
          %283 = dma.done [#allocation8], 2048
        $region60: #{continuous_actor_forward.1} parent=43 // pred_fallthru
          _
        %s284 = sand.u32 %s30, 1
        %s285 = scalar_lea.sflag [#allocation3], %s284
        %s286 = sand.u32 %s30, 1
        %s287 = smul.addr %s286, 8
        %s288 = scalar_lea.vmem [#allocation2], %s287
        %p289 = pneg %p43
        %p290 = pneg %p40
        %p291 = pneg %p64
        %p292 = pneg %p61
        %p293 = pneg %p85
        %p294 = pneg %p82
        %p295 = pneg %p106
        %p296 = pneg %p103
        %p297 = pneg %p127
        %p298 = pneg %p124
        %p299 = pneg %p148
        %p300 = pneg %p145
        %p301 = pneg %p174
        %p302 = pneg %p171
        %p303 = scmp.lt.s32.totalorder %s22, 1
        %s304 = scalar_select %p303, %s22, 1
        %s305 = smul.addr %s304, 8
        %s306 = scalar_lea.vmem %s6, %s305
        %p307 = scmp.lt.s32.totalorder %s22, 1
        %s308 = scalar_select %p307, %s22, 1
        %s309 = smul.addr %s308, 8
        %s310 = scalar_lea.vmem %s6, %s309
        %v311 = vld [vmem:[%s4] sm:$0x3]
        %v312 = vld [vmem:[%s5] sm:$0x7]
        %v313 = vld [vmem:[%s267] sm:$0xff]
        %v314 = vld [vmem:[#allocation4] sm:$0xff]
        %v315 = vld [vmem:[#allocation4 + $0x8] sm:$0xff]
        %v316 = vlaneseq
        %v317 = vshrl.u32 %v316, 7
        %v318 = vsub.s32 0, %v317
        %v319 = vrot.slane %v311, %v318
        %vm320 = vcmask 130048
        %v322 = vsel %vm320, %v313, 0
        %324 = vmatprep.subr.mxu0 0.0
        %325 = vmatpush1.msra.mxu0 %v314
        %326 = vmatprep.subr.mxu0 0.0
        %327 = vmatpush1.msra.mxu0 %v315
        %328 = vmatprep.subr.mxu0 0.0
        %329 = vmatpush1.msra.mxu0 0.0
        %330 = vmatprep.subr.mxu0 0.0
        %331 = vmatpush1.msra.mxu0 0.0
        %332 = vmatprep.subr.mxu0 0.0
        %333 = vmatpush1.msra.mxu0 0.0
        %334 = vmatprep.subr.mxu0 0.0
        %335 = vmatpush1.msra.mxu0 0.0
        %336 = vmatprep.subr.mxu0 0.0
        %337 = vmatpush1.msra.mxu0 0.0
        %338 = vmatprep.subr.mxu0 0.0
        %339 = vmatpush1.msra.mxu0 0.0
        %340 = vmatprep.subr.mxu0 0.0
        %341 = vmatpush1.msra.mxu0 0.0
        %342 = vmatprep.subr.mxu0 0.0
        %343 = vmatpush1.msra.mxu0 0.0
        %344 = vmatprep.subr.mxu0 0.0
        %345 = vmatpush1.msra.mxu0 0.0
        %346 = vmatprep.subr.mxu0 0.0
        %347 = vmatpush1.msra.mxu0 0.0
        %348 = vmatprep.subr.mxu0 0.0
        %349 = vmatpush1.msra.mxu0 0.0
        %350 = vmatprep.subr.mxu0 0.0
        %351 = vmatpush1.msra.mxu0 0.0
        %352 = vmatprep.subr.mxu0 0.0
        %353 = vmatpush1.msra.mxu0 0.0
        %354 = vmatprep.subr.mxu0 0.0
        %355 = vmatpush1.msra.mxu0 0.0
        %356 = vmatprep.subr.mxu0 0.0
        %357 = vmatpush1.msra.mxu0 0.0
        %358 = vmatprep.subr.mxu0 0.0
        %359 = vmatpush1.msra.mxu0 0.0
        %360 = vmatprep.subr.mxu0 0.0
        %361 = vmatpush1.msra.mxu0 0.0
        %362 = vmatprep.subr.mxu0 0.0
        %363 = vmatpush1.msra.mxu0 0.0
        %364 = vmatprep.subr.mxu0 0.0
        %365 = vmatpush1.msra.mxu0 0.0
        %366 = vmatprep.subr.mxu0 0.0
        %367 = vmatpush1.msra.mxu0 0.0
        %368 = vmatprep.subr.mxu0 0.0
        %369 = vmatpush1.msra.mxu0 0.0
        %370 = vmatprep.subr.mxu0 0.0
        %371 = vmatpush1.msra.mxu0 0.0
        %372 = vmatprep.subr.mxu0 0.0
        %373 = vmatpush1.msra.mxu0 0.0
        %374 = vmatprep.subr.mxu0 0.0
        %375 = vmatpush1.msra.mxu0 0.0
        %376 = vmatprep.subr.mxu0 0.0
        %377 = vmatpush1.msra.mxu0 0.0
        %378 = vmatprep.subr.mxu0 0.0
        %379 = vmatpush1.msra.mxu0 0.0
        %380 = vmatprep.subr.mxu0 0.0
        %381 = vmatpush1.msra.mxu0 0.0
        %382 = vmatprep.subr.mxu0 0.0
        %383 = vmatpush1.msra.mxu0 0.0
        %384 = vmatprep.subr.mxu0 0.0
        %385 = vmatpush1.msra.mxu0 0.0
        %386 = vmatprep.subr.mxu0 0.0
        %387 = vmatpush1.msra.mxu0 0.0
        %388 = vmatprep.mubr.f32.mxu0 0.0
        %389 = vmatmul.mubr.f32.gmra.mrb[0].mxu0 %v322
        %v390 = vpop.f32.mrb[0].mxu0
        %v391 = vadd.f32 %v319, %v390
        %v392 = vpop.f32.mrb[0].mxu0
        %393 = vdwg.mxu0
        %v394 = vmax.f32 %v391, 0.0
        %v395 = vld [vmem:[#allocation6] sm:$0xff]
        %v396 = vld [vmem:[#allocation6 + $0x8] sm:$0xff]
        %v397 = vld [vmem:[#allocation6 + $0x10] sm:$0xff]
        %v398 = vld [vmem:[#allocation6 + $0x18] sm:$0xff]
        %v399 = vld [vmem:[#allocation6 + $0x20] sm:$0xff]
        %v400 = vld [vmem:[#allocation6 + $0x28] sm:$0xff]
        %v401 = vld [vmem:[#allocation6 + $0x30] sm:$0xff]
        %v402 = vld [vmem:[#allocation6 + $0x38] sm:$0xff]
        %v403 = vld [vmem:[#allocation6 + $0x40] sm:$0xff]
        %v404 = vld [vmem:[#allocation6 + $0x48] sm:$0xff]
        %v405 = vld [vmem:[#allocation6 + $0x50] sm:$0xff]
        %v406 = vld [vmem:[#allocation6 + $0x58] sm:$0xff]
        %v407 = vld [vmem:[#allocation6 + $0x60] sm:$0xff]
        %v408 = vld [vmem:[#allocation6 + $0x68] sm:$0xff]
        %v409 = vld [vmem:[#allocation6 + $0x70] sm:$0xff]
        %v410 = vld [vmem:[#allocation6 + $0x78] sm:$0xff]
        %v411 = vlaneseq
        %v412 = vshrl.u32 %v411, 7
        %v413 = vsub.s32 1, %v412
        %v414 = vrot.slane %v311, %v413
        %415 = vmatprep.subr.mxu0 0.0
        %416 = vmatpush1.msra.mxu0 %v395
        %417 = vmatprep.subr.mxu0 0.0
        %418 = vmatpush1.msra.mxu0 %v396
        %419 = vmatprep.subr.mxu0 0.0
        %420 = vmatpush1.msra.mxu0 %v397
        %421 = vmatprep.subr.mxu0 0.0
        %422 = vmatpush1.msra.mxu0 %v398
        %423 = vmatprep.subr.mxu0 0.0
        %424 = vmatpush1.msra.mxu0 %v399
        %425 = vmatprep.subr.mxu0 0.0
        %426 = vmatpush1.msra.mxu0 %v400
        %427 = vmatprep.subr.mxu0 0.0
        %428 = vmatpush1.msra.mxu0 %v401
        %429 = vmatprep.subr.mxu0 0.0
        %430 = vmatpush1.msra.mxu0 %v402
        %431 = vmatprep.subr.mxu0 0.0
        %432 = vmatpush1.msra.mxu0 %v403
        %433 = vmatprep.subr.mxu0 0.0
        %434 = vmatpush1.msra.mxu0 %v404
        %435 = vmatprep.subr.mxu0 0.0
        %436 = vmatpush1.msra.mxu0 %v405
        %437 = vmatprep.subr.mxu0 0.0
        %438 = vmatpush1.msra.mxu0 %v406
        %439 = vmatprep.subr.mxu0 0.0
        %440 = vmatpush1.msra.mxu0 %v407
        %441 = vmatprep.subr.mxu0 0.0
        %442 = vmatpush1.msra.mxu0 %v408
        %443 = vmatprep.subr.mxu0 0.0
        %444 = vmatpush1.msra.mxu0 %v409
        %445 = vmatprep.subr.mxu0 0.0
        %446 = vmatpush1.msra.mxu0 %v410
        %447 = vmatprep.subr.mxu0 0.0
        %448 = vmatpush1.msra.mxu0 0.0
        %449 = vmatprep.subr.mxu0 0.0
        %450 = vmatpush1.msra.mxu0 0.0
        %451 = vmatprep.subr.mxu0 0.0
        %452 = vmatpush1.msra.mxu0 0.0
        %453 = vmatprep.subr.mxu0 0.0
        %454 = vmatpush1.msra.mxu0 0.0
        %455 = vmatprep.subr.mxu0 0.0
        %456 = vmatpush1.msra.mxu0 0.0
        %457 = vmatprep.subr.mxu0 0.0
        %458 = vmatpush1.msra.mxu0 0.0
        %459 = vmatprep.subr.mxu0 0.0
        %460 = vmatpush1.msra.mxu0 0.0
        %461 = vmatprep.subr.mxu0 0.0
        %462 = vmatpush1.msra.mxu0 0.0
        %463 = vmatprep.subr.mxu0 0.0
        %464 = vmatpush1.msra.mxu0 0.0
        %465 = vmatprep.subr.mxu0 0.0
        %466 = vmatpush1.msra.mxu0 0.0
        %467 = vmatprep.subr.mxu0 0.0
        %468 = vmatpush1.msra.mxu0 0.0
        %469 = vmatprep.subr.mxu0 0.0
        %470 = vmatpush1.msra.mxu0 0.0
        %471 = vmatprep.subr.mxu0 0.0
        %472 = vmatpush1.msra.mxu0 0.0
        %473 = vmatprep.subr.mxu0 0.0
        %474 = vmatpush1.msra.mxu0 0.0
        %475 = vmatprep.subr.mxu0 0.0
        %476 = vmatpush1.msra.mxu0 0.0
        %477 = vmatprep.subr.mxu0 0.0
        %478 = vmatpush1.msra.mxu0 0.0
        %479 = vmatprep.mubr.f32.mxu0 0.0
        %480 = vmatmul.mubr.f32.gmra.mrb[0].mxu0 %v394
        %v481 = vpop.f32.mrb[0].mxu0
        %v482 = vadd.f32 %v414, %v481
        %v483 = vpop.f32.mrb[0].mxu0
        %484 = vdwg.mxu0
        %v485 = vmax.f32 %v482, 0.0
        %v486 = vld [vmem:[#allocation7] sm:$0xff]
        %v487 = vld [vmem:[#allocation7 + $0x8] sm:$0xff]
        %v488 = vld [vmem:[#allocation7 + $0x10] sm:$0xff]
        %v489 = vld [vmem:[#allocation7 + $0x18] sm:$0xff]
        %v490 = vld [vmem:[#allocation7 + $0x20] sm:$0xff]
        %v491 = vld [vmem:[#allocation7 + $0x28] sm:$0xff]
        %v492 = vld [vmem:[#allocation7 + $0x30] sm:$0xff]
        %v493 = vld [vmem:[#allocation7 + $0x38] sm:$0xff]
        %v494 = vld [vmem:[#allocation7 + $0x40] sm:$0xff]
        %v495 = vld [vmem:[#allocation7 + $0x48] sm:$0xff]
        %v496 = vld [vmem:[#allocation7 + $0x50] sm:$0xff]
        %v497 = vld [vmem:[#allocation7 + $0x58] sm:$0xff]
        %v498 = vld [vmem:[#allocation7 + $0x60] sm:$0xff]
        %v499 = vld [vmem:[#allocation7 + $0x68] sm:$0xff]
        %v500 = vld [vmem:[#allocation7 + $0x70] sm:$0xff]
        %v501 = vld [vmem:[#allocation7 + $0x78] sm:$0xff]
        %v502 = vlaneseq
        %v503 = vshrl.u32 %v502, 7
        %v504 = vsub.s32 0, %v503
        %v505 = vrot.slane %v312, %v504
        %506 = vmatprep.subr.mxu0 0.0
        %507 = vmatpush1.msra.mxu0 %v486
        %508 = vmatprep.subr.mxu0 0.0
        %509 = vmatpush1.msra.mxu0 %v487
        %510 = vmatprep.subr.mxu0 0.0
        %511 = vmatpush1.msra.mxu0 %v488
        %512 = vmatprep.subr.mxu0 0.0
        %513 = vmatpush1.msra.mxu0 %v489
        %514 = vmatprep.subr.mxu0 0.0
        %515 = vmatpush1.msra.mxu0 %v490
        %516 = vmatprep.subr.mxu0 0.0
        %517 = vmatpush1.msra.mxu0 %v491
        %518 = vmatprep.subr.mxu0 0.0
        %519 = vmatpush1.msra.mxu0 %v492
        %520 = vmatprep.subr.mxu0 0.0
        %521 = vmatpush1.msra.mxu0 %v493
        %522 = vmatprep.subr.mxu0 0.0
        %523 = vmatpush1.msra.mxu0 %v494
        %524 = vmatprep.subr.mxu0 0.0
        %525 = vmatpush1.msra.mxu0 %v495
        %526 = vmatprep.subr.mxu0 0.0
        %527 = vmatpush1.msra.mxu0 %v496
        %528 = vmatprep.subr.mxu0 0.0
        %529 = vmatpush1.msra.mxu0 %v497
        %530 = vmatprep.subr.mxu0 0.0
        %531 = vmatpush1.msra.mxu0 %v498
        %532 = vmatprep.subr.mxu0 0.0
        %533 = vmatpush1.msra.mxu0 %v499
        %534 = vmatprep.subr.mxu0 0.0
        %535 = vmatpush1.msra.mxu0 %v500
        %536 = vmatprep.subr.mxu0 0.0
        %537 = vmatpush1.msra.mxu0 %v501
        %538 = vmatprep.subr.mxu0 0.0
        %539 = vmatpush1.msra.mxu0 0.0
        %540 = vmatprep.subr.mxu0 0.0
        %541 = vmatpush1.msra.mxu0 0.0
        %542 = vmatprep.subr.mxu0 0.0
        %543 = vmatpush1.msra.mxu0 0.0
        %544 = vmatprep.subr.mxu0 0.0
        %545 = vmatpush1.msra.mxu0 0.0
        %546 = vmatprep.subr.mxu0 0.0
        %547 = vmatpush1.msra.mxu0 0.0
        %548 = vmatprep.subr.mxu0 0.0
        %549 = vmatpush1.msra.mxu0 0.0
        %550 = vmatprep.subr.mxu0 0.0
        %551 = vmatpush1.msra.mxu0 0.0
        %552 = vmatprep.subr.mxu0 0.0
        %553 = vmatpush1.msra.mxu0 0.0
        %554 = vmatprep.subr.mxu0 0.0
        %555 = vmatpush1.msra.mxu0 0.0
        %556 = vmatprep.subr.mxu0 0.0
        %557 = vmatpush1.msra.mxu0 0.0
        %558 = vmatprep.subr.mxu0 0.0
        %559 = vmatpush1.msra.mxu0 0.0
        %560 = vmatprep.subr.mxu0 0.0
        %561 = vmatpush1.msra.mxu0 0.0
        %562 = vmatprep.subr.mxu0 0.0
        %563 = vmatpush1.msra.mxu0 0.0
        %564 = vmatprep.subr.mxu0 0.0
        %565 = vmatpush1.msra.mxu0 0.0
        %566 = vmatprep.subr.mxu0 0.0
        %567 = vmatpush1.msra.mxu0 0.0
        %568 = vmatprep.subr.mxu0 0.0
        %569 = vmatpush1.msra.mxu0 0.0
        %570 = vmatprep.mubr.f32.mxu0 0.0
        %571 = vmatmul.mubr.f32.gmra.mrb[0].mxu0 %v485
        %v572 = vpop.f32.mrb[0].mxu0
        %v573 = vadd.f32 %v505, %v572
        %v574 = vpop.f32.mrb[0].mxu0
        %575 = vdwg.mxu0
        %v576 = vlaneseq
        %v577 = vshrl.u32 %v576, 7
        %v578 = vsub.s32 1, %v577
        %v579 = vrot.slane %v312, %v578
        %v580 = vmax.f32 %v573, %v579
        %v581 = vlaneseq
        %v582 = vshrl.u32 %v581, 7
        %v583 = vsub.s32 2, %v582
        %v584 = vrot.slane %v312, %v583
        %v585 = vmin.f32 %v580, %v584
        %586 = vst [vmem:[%s310] sm:$0xff] %v585
        %p587 = scmp.lt.s32.totalorder %s22, 1
        %s588 = scalar_select %p587, %s22, 1
        %s589 = smul.addr %s588, 8
        %s590 = scalar_lea.vmem %s6, %s589
        // Predicated region
        $region61: #{continuous_actor_forward.1} parent=43 // pred_check
          %p591 = pneg %p171
        $region62: #{continuous_actor_forward.1} parent=43 // pred_check_branch
          %593 = sbr.rel (%p591) target = $region64
        $region63: #{continuous_actor_forward.1} parent=43 // pred_region
          _
        $region64: #{continuous_actor_forward.1} parent=43 // pred_fallthru
          _
      $region44: #{continuous_actor_forward.1} parent=5 // pred_fallthru
        _
      %p594 = scmp.le.s32.totalorder 2, %s17
      // Predicated region
      $region65: #{continuous_actor_forward.1} parent=5 // pred_check
        %p595 = pneg %p594
      $region66: #{continuous_actor_forward.1} parent=5 // pred_check_branch
        %597 = sbr.rel (%p595) target = $region68
      $region67: #{continuous_actor_forward.1} parent=5 // pred_region
        %s598 = ssub.s32 %s17, 2
        // Predicated region
        $region69: #{continuous_actor_forward.1} parent=67 // pred_check
          %p599 = pneg %p177
        $region70: #{continuous_actor_forward.1} parent=67 // pred_check_branch
          %601 = sbr.rel (%p599) target = $region72
        $region71: #{continuous_actor_forward.1} parent=67 // pred_region
          %p602 = scmp.lt.s32.totalorder %s23, 1
          %s603 = scalar_select %p602, %s23, 1
          %s604 = smul.addr %s603, 8
          %s605 = scalar_lea.vmem %s6, %s604
        $region72: #{continuous_actor_forward.1} parent=67 // pred_fallthru
          _
      $region68: #{continuous_actor_forward.1} parent=5 // pred_fallthru
        _
    $region6: #{continuous_actor_forward.1} parent=1 // loop_footer
      %s21 = sadd.s32 1, %s17
    $region7: #{continuous_actor_forward.1} parent=1 // loop_footer_branch
      %16 = sbr.rel target = $region3
    $region8: #{continuous_actor_forward.1} parent=1 // loop_exit
      _
    %606 = vsyncpa [#allocation3], 1
    %s607 = scalar_lea.sflag [#allocation3], 1
    %608 = vsyncpa %s607, 1
    %609 = vsyncpa [#allocation5], 1
    %610 = vsyncpa [#allocation8], 1

// kernel: continuous_actor_forward.1
$region0: #{continuous_actor_forward.1}
  #allocation0 [shape = 'u32[]', space=smem, size = 0x4, offset = 0x4, fixed_abs, tag = 'smem constant byte address 0x4 - core index']
  #allocation1 [shape = 'u32[144,128]{1,0:T(1,128)}', space=vmem, size = 0x12000, scoped, tag = 'internal scratch']
  %s0 = inlined_call_operand.hbm [shape: f32[16,16], index: 0, kind: input, shape index: {}]
  %s1 = inlined_call_operand.hbm [shape: f32[16,128], index: 1, kind: input, shape index: {}]
  %s2 = inlined_call_operand.hbm [shape: f32[128,128], index: 2, kind: input, shape index: {}]
  %s3 = inlined_call_operand.hbm [shape: f32[128,128], index: 3, kind: input, shape index: {}]
  %s4 = inlined_call_operand.vmem [shape: f32[2,128], index: 4, kind: input, shape index: {}]
  %s5 = inlined_call_operand.vmem [shape: f32[3,128], index: 5, kind: input, shape index: {}]
  %s6 = inlined_call_operand.vmem [shape: f32[16,128], index: 6, kind: output, shape index: {}]
  %s7 = sld [smem:[#allocation0]]
  $region73: #{continuous_actor_forward.1} parent=0
    _
  %s9 = ssub.s32 1, %s7
  %s10 = scalar_select 0, %s9, %s7
  $region1: #{continuous_actor_forward.1} parent=0
    #allocation2 [shape = 'u8[8192]{0}', space=vmem, size = 0x2000, scoped, tag = 'input window, operand 0']
    #allocation3 [shape = 's32[2]{0}', space=sflag, size = 0x8, scoped, tag = 'scoped memory for continuous_actor_forward.1']
    #allocation4 [shape = 'u8[8192]{0}', space=vmem, size = 0x2000, scoped, tag = 'input window, operand 1, single buffered']
    #allocation5 [shape = 's32[1]{0}', space=sflag, size = 0x4, scoped, tag = 'scoped memory for continuous_actor_forward.1']
    #allocation6 [shape = 'u8[65536]{0}', space=vmem, size = 0x10000, scoped, tag = 'input window, operand 2, single buffered']
    #allocation7 [shape = 'u8[65536]{0}', space=vmem, size = 0x10000, scoped, tag = 'input window, operand 3, single buffered']
    #allocation8 [shape = 's32[1]{0}', space=sflag, size = 0x4, scoped, tag = 'scoped memory for continuous_actor_forward.1']
    %11 = vsyncpa [#allocation3], 0
    %s12 = scalar_lea.sflag [#allocation3], 1
    %13 = vsyncpa %s12, 0
    %14 = vsyncpa [#allocation5], 0
    %15 = vsyncpa [#allocation8], 0
    loop: start=0, step=1, limit=4
    $region2: #{continuous_actor_forward.1} parent=1 // loop_pre_header
      _
    $region3: #{continuous_actor_forward.1} parent=1 // loop_header
      %s17 = sphi 0, %s21
      %p18 = scmp.ge.s32.totalorder %s17, 4
      %s27 = sphi 0, %s29
      %s30 = sphi 0, %s27
      %s31 = sphi 0, %s30
      %s47 = sphi 0, %s31
      %s51 = sphi 0, %s51
      %s53 = sphi 0, %s51
      %s54 = sphi 0, %s53
      %s68 = sphi 0, %s54
      %s72 = sphi 0, %s72
      %s74 = sphi 0, %s72
      %s75 = sphi 0, %s74
      %s89 = sphi 0, %s75
      %s93 = sphi 0, %s93
      %s95 = sphi 0, %s93
      %s96 = sphi 0, %s95
      %s110 = sphi 0, %s96
      %s114 = sphi 0, %s114
      %s116 = sphi 0, %s114
      %s117 = sphi 0, %s116
      %s131 = sphi 0, %s117
      %s135 = sphi 0, %s135
      %s137 = sphi 0, %s135
      %s138 = sphi 0, %s137
      %s152 = sphi 0, %s138
      %s158 = sphi 0, %s160
      %s161 = sphi 0, %s158
      %s162 = sphi 0, %s161
      %s178 = sphi 0, %s162
    $region4: #{continuous_actor_forward.1} parent=1 // loop_header_branch
      %20 = sbr.rel (%p18) target = $region8
    $region5: #{continuous_actor_forward.1} parent=1 // loop_body
      %s22 = ssub.s32 %s17, 1
      %s23 = ssub.s32 %s17, 2
      %s24 = sadd.s32 %s17, 1
      %s25 = ssub.s32 %s17, %s24
      %p26 = scmp.eq.s32.totalorder %s25, 0
      %s28 = sadd.s32 %s27, 1
      %s29 = scalar_select %p26, %s27, %s28
      %p32 = pneg %p26
      %p33 = scmp.eq.s32.totalorder %s17, 1
      %p34 = por %p32, %p33
      %p35 = scmp.ne.s32.totalorder %s27, %s30
      %p36 = scmp.eq.s32.totalorder %s17, 0
      %p37 = por %p35, %p36
      %p38 = scmp.ne.s32.totalorder %s27, %s30
      %p39 = scmp.eq.s32.totalorder %s22, 1
      %p40 = por %p38, %p39
      %p41 = scmp.ne.s32.totalorder %s30, %s31
      %p42 = scmp.eq.s32.totalorder %s22, 0
      %p43 = por %p41, %p42
      %p44 = scmp.ne.s32.totalorder %s30, %s31
      %p45 = scmp.eq.s32.totalorder %s23, 1
      %p46 = por %p44, %p45
      %p48 = scmp.ne.s32.totalorder %s31, %s47
      %p49 = scmp.eq.s32.totalorder %s23, 0
      %p50 = por %p48, %p49
      %s52 = sadd.s32 %s51, 1
      %p55 = scmp.eq.s32.totalorder %s17, 1
      %p56 = scmp.ne.s32.totalorder %s51, %s53
      %p57 = scmp.eq.s32.totalorder %s17, 0
      %p58 = por %p56, %p57
      %p59 = scmp.ne.s32.totalorder %s51, %s53
      %p60 = scmp.eq.s32.totalorder %s22, 1
      %p61 = por %p59, %p60
      %p62 = scmp.ne.s32.totalorder %s53, %s54
      %p63 = scmp.eq.s32.totalorder %s22, 0
      %p64 = por %p62, %p63
      %p65 = scmp.ne.s32.totalorder %s53, %s54
      %p66 = scmp.eq.s32.totalorder %s23, 1
      %p67 = por %p65, %p66
      %p69 = scmp.ne.s32.totalorder %s54, %s68
      %p70 = scmp.eq.s32.totalorder %s23, 0
      %p71 = por %p69, %p70
      %s73 = sadd.s32 %s72, 1
      %p76 = scmp.eq.s32.totalorder %s17, 1
      %p77 = scmp.ne.s32.totalorder %s72, %s74
      %p78 = scmp.eq.s32.totalorder %s17, 0
      %p79 = por %p77, %p78
      %p80 = scmp.ne.s32.totalorder %s72, %s74
      %p81 = scmp.eq.s32.totalorder %s22, 1
      %p82 = por %p80, %p81
      %p83 = scmp.ne.s32.totalorder %s74, %s75
      %p84 = scmp.eq.s32.totalorder %s22, 0
      %p85 = por %p83, %p84
      %p86 = scmp.ne.s32.totalorder %s74, %s75
      %p87 = scmp.eq.s32.totalorder %s23, 1
      %p88 = por %p86, %p87
      %p90 = scmp.ne.s32.totalorder %s75, %s89
      %p91 = scmp.eq.s32.totalorder %s23, 0
      %p92 = por %p90, %p91
      %s94 = sadd.s32 %s93, 1
      %p97 = scmp.eq.s32.totalorder %s17, 1
      %p98 = scmp.ne.s32.totalorder %s93, %s95
      %p99 = scmp.eq.s32.totalorder %s17, 0
      %p100 = por %p98, %p99
      %p101 = scmp.ne.s32.totalorder %s93, %s95
      %p102 = scmp.eq.s32.totalorder %s22, 1
      %p103 = por %p101, %p102
      %p104 = scmp.ne.s32.totalorder %s95, %s96
      %p105 = scmp.eq.s32.totalorder %s22, 0
      %p106 = por %p104, %p105
      %p107 = scmp.ne.s32.totalorder %s95, %s96
      %p108 = scmp.eq.s32.totalorder %s23, 1
      %p109 = por %p107, %p108
      %p111 = scmp.ne.s32.totalorder %s96, %s110
      %p112 = scmp.eq.s32.totalorder %s23, 0
      %p113 = por %p111, %p112
      %s115 = sadd.s32 %s114, 1
      %p118 = scmp.eq.s32.totalorder %s17, 1
      %p119 = scmp.ne.s32.totalorder %s114, %s116
      %p120 = scmp.eq.s32.totalorder %s17, 0
      %p121 = por %p119, %p120
      %p122 = scmp.ne.s32.totalorder %s114, %s116
      %p123 = scmp.eq.s32.totalorder %s22, 1
      %p124 = por %p122, %p123
      %p125 = scmp.ne.s32.totalorder %s116, %s117
      %p126 = scmp.eq.s32.totalorder %s22, 0
      %p127 = por %p125, %p126
      %p128 = scmp.ne.s32.totalorder %s116, %s117
      %p129 = scmp.eq.s32.totalorder %s23, 1
      %p130 = por %p128, %p129
      %p132 = scmp.ne.s32.totalorder %s117, %s131
      %p133 = scmp.eq.s32.totalorder %s23, 0
      %p134 = por %p132, %p133
      %s136 = sadd.s32 %s135, 1
      %p139 = scmp.eq.s32.totalorder %s17, 1
      %p140 = scmp.ne.s32.totalorder %s135, %s137
      %p141 = scmp.eq.s32.totalorder %s17, 0
      %p142 = por %p140, %p141
      %p143 = scmp.ne.s32.totalorder %s135, %s137
      %p144 = scmp.eq.s32.totalorder %s22, 1
      %p145 = por %p143, %p144
      %p146 = scmp.ne.s32.totalorder %s137, %s138
      %p147 = scmp.eq.s32.totalorder %s22, 0
      %p148 = por %p146, %p147
      %p149 = scmp.ne.s32.totalorder %s137, %s138
      %p150 = scmp.eq.s32.totalorder %s23, 1
      %p151 = por %p149, %p150
      %p153 = scmp.ne.s32.totalorder %s138, %s152
      %p154 = scmp.eq.s32.totalorder %s23, 0
      %p155 = por %p153, %p154
      %s156 = ssub.s32 %s17, %s24
      %p157 = scmp.eq.s32.totalorder %s156, 0
      %s159 = sadd.s32 %s158, 1
      %s160 = scalar_select %p157, %s158, %s159
      %p163 = pneg %p157
      %p164 = scmp.eq.s32.totalorder %s17, 1
      %p165 = por %p163, %p164
      %p166 = scmp.ne.s32.totalorder %s158, %s161
      %p167 = scmp.eq.s32.totalorder %s17, 0
      %p168 = por %p166, %p167
      %p169 = scmp.ne.s32.totalorder %s158, %s161
      %p170 = scmp.eq.s32.totalorder %s22, 1
      %p171 = por %p169, %p170
      %p172 = scmp.ne.s32.totalorder %s161, %s162
      %p173 = scmp.eq.s32.totalorder %s22, 0
      %p174 = por %p172, %p173
      %p175 = scmp.ne.s32.totalorder %s161, %s162
      %p176 = scmp.eq.s32.totalorder %s23, 1
      %p177 = por %p175, %p176
      %p179 = scmp.ne.s32.totalorder %s162, %s178
      %p180 = scmp.eq.s32.totalorder %s23, 0
      %p181 = por %p179, %p180
      %p182 = scmp.le.s32.totalorder 1, %s17
      %p183 = scmp.lt.s32.totalorder %s17, 3
      %p184 = pnand %p182, %p183
      %p185 = pneg %p184
      // Predicated region
      $region9: #{continuous_actor_forward.1} parent=5 // pred_check
        _
      $region10: #{continuous_actor_forward.1} parent=5 // pred_check_branch
        %187 = sbr.rel (%p184) target = $region12
      $region11: #{continuous_actor_forward.1} parent=5 // pred_region
        %s188 = ssub.s32 %s17, 1
        // Predicated region
        $region13: #{continuous_actor_forward.1} parent=11 // pred_check
          %p189 = pneg %p64
        $region14: #{continuous_actor_forward.1} parent=11 // pred_check_branch
          %191 = sbr.rel (%p189) target = $region16
        $region15: #{continuous_actor_forward.1} parent=11 // pred_region
          %s193 = ssub.s32 256, 256
          %194 = vsyncadd [#allocation5], %s193
          %s195 = sshll.u32 [#allocation4], 4
          %s196 = int_to_ptr.vmem [resolvable:$true] %s195
          %201 = dma.hbm_to_vmem [thread:$0]  %s1, 256, %s196, [#allocation5], 128, 128, 8
        $region16: #{continuous_actor_forward.1} parent=11 // pred_fallthru
          _
        // Predicated region
        $region17: #{continuous_actor_forward.1} parent=11 // pred_check
          %p202 = pneg %p85
        $region18: #{continuous_actor_forward.1} parent=11 // pred_check_branch
          %204 = sbr.rel (%p202) target = $region20
        $region19: #{continuous_actor_forward.1} parent=11 // pred_region
          %s206 = ssub.s32 2048, 2048
          %207 = vsyncadd [#allocation5], %s206
          %s208 = sshll.u32 [#allocation6], 4
          %s209 = int_to_ptr.vmem [resolvable:$true] %s208
          %214 = dma.hbm_to_vmem [thread:$0]  %s2, 2048, %s209, [#allocation5], 128, 128, 8
        $region20: #{continuous_actor_forward.1} parent=11 // pred_fallthru
          _
        // Predicated region
        $region21: #{continuous_actor_forward.1} parent=11 // pred_check
          %p215 = pneg %p106
        $region22: #{continuous_actor_forward.1} parent=11 // pred_check_branch
          %217 = sbr.rel (%p215) target = $region24
        $region23: #{continuous_actor_forward.1} parent=11 // pred_region
          %s219 = ssub.s32 2048, 2048
          %220 = vsyncadd [#allocation8], %s219
          %s221 = sshll.u32 [#allocation7], 4
          %s222 = int_to_ptr.vmem [resolvable:$true] %s221
          %227 = dma.hbm_to_vmem [thread:$0]  %s3, 2048, %s222, [#allocation8], 128, 128, 8
        $region24: #{continuous_actor_forward.1} parent=11 // pred_fallthru
          _
        // Predicated region
        $region25: #{continuous_actor_forward.1} parent=11 // pred_check
          %p228 = pneg %p127
        $region26: #{continuous_actor_forward.1} parent=11 // pred_check_branch
          %230 = sbr.rel (%p228) target = $region28
        $region27: #{continuous_actor_forward.1} parent=11 // pred_region
          _
        $region28: #{continuous_actor_forward.1} parent=11 // pred_fallthru
          _
        // Predicated region
        $region29: #{continuous_actor_forward.1} parent=11 // pred_check
          %p231 = pneg %p148
        $region30: #{continuous_actor_forward.1} parent=11 // pred_check_branch
          %233 = sbr.rel (%p231) target = $region32
        $region31: #{continuous_actor_forward.1} parent=11 // pred_region
          _
        $region32: #{continuous_actor_forward.1} parent=11 // pred_fallthru
          _
      $region12: #{continuous_actor_forward.1} parent=5 // pred_fallthru
        _
      %p234 = scmp.lt.s32.totalorder %s17, 2
      // Predicated region
      $region33: #{continuous_actor_forward.1} parent=5 // pred_check
        %p235 = pneg %p234
      $region34: #{continuous_actor_forward.1} parent=5 // pred_check_branch
        %237 = sbr.rel (%p235) target = $region36
      $region35: #{continuous_actor_forward.1} parent=5 // pred_region
        // Predicated region
        $region37: #{continuous_actor_forward.1} parent=35 // pred_check
          %p238 = pneg %p37
        $region38: #{continuous_actor_forward.1} parent=35 // pred_check_branch
          %240 = sbr.rel (%p238) target = $region40
        $region39: #{continuous_actor_forward.1} parent=35 // pred_region
          %s241 = sand.u32 %s27, 1
          %s242 = scalar_lea.sflag [#allocation3], %s241
          %s243 = sand.u32 %s27, 1
          %s244 = smul.addr %s243, 8
          %s245 = scalar_lea.vmem [#allocation2], %s244
          %s247 = ssub.s32 128, 128
          %248 = vsyncadd %s242, %s247
          %s249 = smul.addr %s17, 128
          %s250 = scalar_lea.hbm %s0, %s249
          %s252 = sshll.u32 %s245, 4
          %s253 = int_to_ptr.vmem [resolvable:$true] %s252
          %255 = dma.hbm_to_vmem [thread:$0]  %s250, 128, %s253, %s242
        $region40: #{continuous_actor_forward.1} parent=35 // pred_fallthru
          _
      $region36: #{continuous_actor_forward.1} parent=5 // pred_fallthru
        _
      %p256 = scmp.le.s32.totalorder 1, %s17
      %p257 = scmp.lt.s32.totalorder %s17, 3
      %p258 = pnand %p256, %p257
      %p259 = pneg %p258
      // Predicated region
      $region41: #{continuous_actor_forward.1} parent=5 // pred_check
        _
      $region42: #{continuous_actor_forward.1} parent=5 // pred_check_branch
        %261 = sbr.rel (%p258) target = $region44
      $region43: #{continuous_actor_forward.1} parent=5 // pred_region
        %s262 = ssub.s32 %s17, 1
        %s263 = sand.u32 %s30, 1
        %s264 = scalar_lea.sflag [#allocation3], %s263
        %s265 = sand.u32 %s30, 1
        %s266 = smul.addr %s265, 8
        %s267 = scalar_lea.vmem [#allocation2], %s266
        // Predicated region
        $region45: #{continuous_actor_forward.1} parent=43 // pred_check
          %p268 = pneg %p43
        $region46: #{continuous_actor_forward.1} parent=43 // pred_check_branch
          %270 = sbr.rel (%p268) target = $region48
        $region47: #{continuous_actor_forward.1} parent=43 // pred_region
          %271 = dma.done %s264, 128
        $region48: #{continuous_actor_forward.1} parent=43 // pred_fallthru
          _
        // Predicated region
        $region49: #{continuous_actor_forward.1} parent=43 // pred_check
          %p272 = pneg %p64
        $region50: #{continuous_actor_forward.1} parent=43 // pred_check_branch
          %274 = sbr.rel (%p272) target = $region52
        $region51: #{continuous_actor_forward.1} parent=43 // pred_region
          %275 = dma.done [#allocation5], 256
        $region52: #{continuous_actor_forward.1} parent=43 // pred_fallthru
          _
        // Predicated region
        $region53: #{continuous_actor_forward.1} parent=43 // pred_check
          %p276 = pneg %p85
        $region54: #{continuous_actor_forward.1} parent=43 // pred_check_branch
          %278 = sbr.rel (%p276) target = $region56
        $region55: #{continuous_actor_forward.1} parent=43 // pred_region
          %279 = dma.done [#allocation5], 2048
        $region56: #{continuous_actor_forward.1} parent=43 // pred_fallthru
          _
        // Predicated region
        $region57: #{continuous_actor_forward.1} parent=43 // pred_check
          %p280 = pneg %p106
        $region58: #{continuous_actor_forward.1} parent=43 // pred_check_branch
          %282 = sbr.rel (%p280) target = $region60
        $region59: #{continuous_actor_forward.1} parent=43 // pred_region
          %283 = dma.done [#allocation8], 2048
        $region60: #{continuous_actor_forward.1} parent=43 // pred_fallthru
          _
        %s284 = sand.u32 %s30, 1
        %s285 = scalar_lea.sflag [#allocation3], %s284
        %s286 = sand.u32 %s30, 1
        %s287 = smul.addr %s286, 8
        %s288 = scalar_lea.vmem [#allocation2], %s287
        %p289 = pneg %p43
        %p290 = pneg %p40
        %p291 = pneg %p64
        %p292 = pneg %p61
        %p293 = pneg %p85
        %p294 = pneg %p82
        %p295 = pneg %p106
        %p296 = pneg %p103
        %p297 = pneg %p127
        %p298 = pneg %p124
        %p299 = pneg %p148
        %p300 = pneg %p145
        %p301 = pneg %p174
        %p302 = pneg %p171
        %p303 = scmp.lt.s32.totalorder %s22, 1
        %s304 = scalar_select %p303, %s22, 1
        %s305 = smul.addr %s304, 8
        %s306 = scalar_lea.vmem %s6, %s305
        %p307 = scmp.lt.s32.totalorder %s22, 1
        %s308 = scalar_select %p307, %s22, 1
        %s309 = smul.addr %s308, 8
        %s310 = scalar_lea.vmem %s6, %s309
        %v311 = vld [vmem:[%s4] sm:$0x3]
        %v312 = vld [vmem:[%s5] sm:$0x7]
        %v313 = vld [vmem:[%s267] sm:$0xff]
        %v314 = vld [vmem:[#allocation4] sm:$0xff]
        %v315 = vld [vmem:[#allocation4 + $0x8] sm:$0xff]
        %v316 = vlaneseq
        %v317 = vshrl.u32 %v316, 7
        %v318 = vsub.s32 0, %v317
        %v319 = vrot.slane %v311, %v318
        %vm320 = vcmask 130048
        %v322 = vsel %vm320, %v313, 0
        %324 = vmatprep.subr.mxu0 0.0
        %325 = vmatpush1.msra.mxu0 %v314
        %326 = vmatprep.subr.mxu0 0.0
        %327 = vmatpush1.msra.mxu0 %v315
        %328 = vmatprep.subr.mxu0 0.0
        %329 = vmatpush1.msra.mxu0 0.0
        %330 = vmatprep.subr.mxu0 0.0
        %331 = vmatpush1.msra.mxu0 0.0
        %332 = vmatprep.subr.mxu0 0.0
        %333 = vmatpush1.msra.mxu0 0.0
        %334 = vmatprep.subr.mxu0 0.0
        %335 = vmatpush1.msra.mxu0 0.0
        %336 = vmatprep.subr.mxu0 0.0
        %337 = vmatpush1.msra.mxu0 0.0
        %338 = vmatprep.subr.mxu0 0.0
        %339 = vmatpush1.msra.mxu0 0.0
        %340 = vmatprep.subr.mxu0 0.0
        %341 = vmatpush1.msra.mxu0 0.0
        %342 = vmatprep.subr.mxu0 0.0
        %343 = vmatpush1.msra.mxu0 0.0
        %344 = vmatprep.subr.mxu0 0.0
        %345 = vmatpush1.msra.mxu0 0.0
        %346 = vmatprep.subr.mxu0 0.0
        %347 = vmatpush1.msra.mxu0 0.0
        %348 = vmatprep.subr.mxu0 0.0
        %349 = vmatpush1.msra.mxu0 0.0
        %350 = vmatprep.subr.mxu0 0.0
        %351 = vmatpush1.msra.mxu0 0.0
        %352 = vmatprep.subr.mxu0 0.0
        %353 = vmatpush1.msra.mxu0 0.0
        %354 = vmatprep.subr.mxu0 0.0
        %355 = vmatpush1.msra.mxu0 0.0
        %356 = vmatprep.subr.mxu0 0.0
        %357 = vmatpush1.msra.mxu0 0.0
        %358 = vmatprep.subr.mxu0 0.0
        %359 = vmatpush1.msra.mxu0 0.0
        %360 = vmatprep.subr.mxu0 0.0
        %361 = vmatpush1.msra.mxu0 0.0
        %362 = vmatprep.subr.mxu0 0.0
        %363 = vmatpush1.msra.mxu0 0.0
        %364 = vmatprep.subr.mxu0 0.0
        %365 = vmatpush1.msra.mxu0 0.0
        %366 = vmatprep.subr.mxu0 0.0
        %367 = vmatpush1.msra.mxu0 0.0
        %368 = vmatprep.subr.mxu0 0.0
        %369 = vmatpush1.msra.mxu0 0.0
        %370 = vmatprep.subr.mxu0 0.0
        %371 = vmatpush1.msra.mxu0 0.0
        %372 = vmatprep.subr.mxu0 0.0
        %373 = vmatpush1.msra.mxu0 0.0
        %374 = vmatprep.subr.mxu0 0.0
        %375 = vmatpush1.msra.mxu0 0.0
        %376 = vmatprep.subr.mxu0 0.0
        %377 = vmatpush1.msra.mxu0 0.0
        %378 = vmatprep.subr.mxu0 0.0
        %379 = vmatpush1.msra.mxu0 0.0
        %380 = vmatprep.subr.mxu0 0.0
        %381 = vmatpush1.msra.mxu0 0.0
        %382 = vmatprep.subr.mxu0 0.0
        %383 = vmatpush1.msra.mxu0 0.0
        %384 = vmatprep.subr.mxu0 0.0
        %385 = vmatpush1.msra.mxu0 0.0
        %386 = vmatprep.subr.mxu0 0.0
        %387 = vmatpush1.msra.mxu0 0.0
        %388 = vmatprep.mubr.f32.mxu0 0.0
        %389 = vmatmul.mubr.f32.gmra.mrb[0].mxu0 %v322
        %v390 = vpop.f32.mrb[0].mxu0
        %v391 = vadd.f32 %v319, %v390
        %v392 = vpop.f32.mrb[0].mxu0
        %393 = vdwg.mxu0
        %v394 = vmax.f32 %v391, 0.0
        %v395 = vld [vmem:[#allocation6] sm:$0xff]
        %v396 = vld [vmem:[#allocation6 + $0x8] sm:$0xff]
        %v397 = vld [vmem:[#allocation6 + $0x10] sm:$0xff]
        %v398 = vld [vmem:[#allocation6 + $0x18] sm:$0xff]
        %v399 = vld [vmem:[#allocation6 + $0x20] sm:$0xff]
        %v400 = vld [vmem:[#allocation6 + $0x28] sm:$0xff]
        %v401 = vld [vmem:[#allocation6 + $0x30] sm:$0xff]
        %v402 = vld [vmem:[#allocation6 + $0x38] sm:$0xff]
        %v403 = vld [vmem:[#allocation6 + $0x40] sm:$0xff]
        %v404 = vld [vmem:[#allocation6 + $0x48] sm:$0xff]
        %v405 = vld [vmem:[#allocation6 + $0x50] sm:$0xff]
        %v406 = vld [vmem:[#allocation6 + $0x58] sm:$0xff]
        %v407 = vld [vmem:[#allocation6 + $0x60] sm:$0xff]
        %v408 = vld [vmem:[#allocation6 + $0x68] sm:$0xff]
        %v409 = vld [vmem:[#allocation6 + $0x70] sm:$0xff]
        %v410 = vld [vmem:[#allocation6 + $0x78] sm:$0xff]
        %v411 = vlaneseq
        %v412 = vshrl.u32 %v411, 7
        %v413 = vsub.s32 1, %v412
        %v414 = vrot.slane %v311, %v413
        %415 = vmatprep.subr.mxu0 0.0
        %416 = vmatpush1.msra.mxu0 %v395
        %417 = vmatprep.subr.mxu0 0.0
        %418 = vmatpush1.msra.mxu0 %v396
        %419 = vmatprep.subr.mxu0 0.0
        %420 = vmatpush1.msra.mxu0 %v397
        %421 = vmatprep.subr.mxu0 0.0
        %422 = vmatpush1.msra.mxu0 %v398
        %423 = vmatprep.subr.mxu0 0.0
        %424 = vmatpush1.msra.mxu0 %v399
        %425 = vmatprep.subr.mxu0 0.0
        %426 = vmatpush1.msra.mxu0 %v400
        %427 = vmatprep.subr.mxu0 0.0
        %428 = vmatpush1.msra.mxu0 %v401
        %429 = vmatprep.subr.mxu0 0.0
        %430 = vmatpush1.msra.mxu0 %v402
        %431 = vmatprep.subr.mxu0 0.0
        %432 = vmatpush1.msra.mxu0 %v403
        %433 = vmatprep.subr.mxu0 0.0
        %434 = vmatpush1.msra.mxu0 %v404
        %435 = vmatprep.subr.mxu0 0.0
        %436 = vmatpush1.msra.mxu0 %v405
        %437 = vmatprep.subr.mxu0 0.0
        %438 = vmatpush1.msra.mxu0 %v406
        %439 = vmatprep.subr.mxu0 0.0
        %440 = vmatpush1.msra.mxu0 %v407
        %441 = vmatprep.subr.mxu0 0.0
        %442 = vmatpush1.msra.mxu0 %v408
        %443 = vmatprep.subr.mxu0 0.0
        %444 = vmatpush1.msra.mxu0 %v409
        %445 = vmatprep.subr.mxu0 0.0
        %446 = vmatpush1.msra.mxu0 %v410
        %447 = vmatprep.subr.mxu0 0.0
        %448 = vmatpush1.msra.mxu0 0.0
        %449 = vmatprep.subr.mxu0 0.0
        %450 = vmatpush1.msra.mxu0 0.0
        %451 = vmatprep.subr.mxu0 0.0
        %452 = vmatpush1.msra.mxu0 0.0
        %453 = vmatprep.subr.mxu0 0.0
        %454 = vmatpush1.msra.mxu0 0.0
        %455 = vmatprep.subr.mxu0 0.0
        %456 = vmatpush1.msra.mxu0 0.0
        %457 = vmatprep.subr.mxu0 0.0
        %458 = vmatpush1.msra.mxu0 0.0
        %459 = vmatprep.subr.mxu0 0.0
        %460 = vmatpush1.msra.mxu0 0.0
        %461 = vmatprep.subr.mxu0 0.0
        %462 = vmatpush1.msra.mxu0 0.0
        %463 = vmatprep.subr.mxu0 0.0
        %464 = vmatpush1.msra.mxu0 0.0
        %465 = vmatprep.subr.mxu0 0.0
        %466 = vmatpush1.msra.mxu0 0.0
        %467 = vmatprep.subr.mxu0 0.0
        %468 = vmatpush1.msra.mxu0 0.0
        %469 = vmatprep.subr.mxu0 0.0
        %470 = vmatpush1.msra.mxu0 0.0
        %471 = vmatprep.subr.mxu0 0.0
        %472 = vmatpush1.msra.mxu0 0.0
        %473 = vmatprep.subr.mxu0 0.0
        %474 = vmatpush1.msra.mxu0 0.0
        %475 = vmatprep.subr.mxu0 0.0
        %476 = vmatpush1.msra.mxu0 0.0
        %477 = vmatprep.subr.mxu0 0.0
        %478 = vmatpush1.msra.mxu0 0.0
        %479 = vmatprep.mubr.f32.mxu0 0.0
        %480 = vmatmul.mubr.f32.gmra.mrb[0].mxu0 %v394
        %v481 = vpop.f32.mrb[0].mxu0
        %v482 = vadd.f32 %v414, %v481
        %v483 = vpop.f32.mrb[0].mxu0
        %484 = vdwg.mxu0
        %v485 = vmax.f32 %v482, 0.0
        %v486 = vld [vmem:[#allocation7] sm:$0xff]
        %v487 = vld [vmem:[#allocation7 + $0x8] sm:$0xff]
        %v488 = vld [vmem:[#allocation7 + $0x10] sm:$0xff]
        %v489 = vld [vmem:[#allocation7 + $0x18] sm:$0xff]
        %v490 = vld [vmem:[#allocation7 + $0x20] sm:$0xff]
        %v491 = vld [vmem:[#allocation7 + $0x28] sm:$0xff]
        %v492 = vld [vmem:[#allocation7 + $0x30] sm:$0xff]
        %v493 = vld [vmem:[#allocation7 + $0x38] sm:$0xff]
        %v494 = vld [vmem:[#allocation7 + $0x40] sm:$0xff]
        %v495 = vld [vmem:[#allocation7 + $0x48] sm:$0xff]
        %v496 = vld [vmem:[#allocation7 + $0x50] sm:$0xff]
        %v497 = vld [vmem:[#allocation7 + $0x58] sm:$0xff]
        %v498 = vld [vmem:[#allocation7 + $0x60] sm:$0xff]
        %v499 = vld [vmem:[#allocation7 + $0x68] sm:$0xff]
        %v500 = vld [vmem:[#allocation7 + $0x70] sm:$0xff]
        %v501 = vld [vmem:[#allocation7 + $0x78] sm:$0xff]
        %v502 = vlaneseq
        %v503 = vshrl.u32 %v502, 7
        %v504 = vsub.s32 0, %v503
        %v505 = vrot.slane %v312, %v504
        %506 = vmatprep.subr.mxu0 0.0
        %507 = vmatpush1.msra.mxu0 %v486
        %508 = vmatprep.subr.mxu0 0.0
        %509 = vmatpush1.msra.mxu0 %v487
        %510 = vmatprep.subr.mxu0 0.0
        %511 = vmatpush1.msra.mxu0 %v488
        %512 = vmatprep.subr.mxu0 0.0
        %513 = vmatpush1.msra.mxu0 %v489
        %514 = vmatprep.subr.mxu0 0.0
        %515 = vmatpush1.msra.mxu0 %v490
        %516 = vmatprep.subr.mxu0 0.0
        %517 = vmatpush1.msra.mxu0 %v491
        %518 = vmatprep.subr.mxu0 0.0
        %519 = vmatpush1.msra.mxu0 %v492
        %520 = vmatprep.subr.mxu0 0.0
        %521 = vmatpush1.msra.mxu0 %v493
        %522 = vmatprep.subr.mxu0 0.0
        %523 = vmatpush1.msra.mxu0 %v494
        %524 = vmatprep.subr.mxu0 0.0
        %525 = vmatpush1.msra.mxu0 %v495
        %526 = vmatprep.subr.mxu0 0.0
        %527 = vmatpush1.msra.mxu0 %v496
        %528 = vmatprep.subr.mxu0 0.0
        %529 = vmatpush1.msra.mxu0 %v497
        %530 = vmatprep.subr.mxu0 0.0
        %531 = vmatpush1.msra.mxu0 %v498
        %532 = vmatprep.subr.mxu0 0.0
        %533 = vmatpush1.msra.mxu0 %v499
        %534 = vmatprep.subr.mxu0 0.0
        %535 = vmatpush1.msra.mxu0 %v500
        %536 = vmatprep.subr.mxu0 0.0
        %537 = vmatpush1.msra.mxu0 %v501
        %538 = vmatprep.subr.mxu0 0.0
        %539 = vmatpush1.msra.mxu0 0.0
        %540 = vmatprep.subr.mxu0 0.0
        %541 = vmatpush1.msra.mxu0 0.0
        %542 = vmatprep.subr.mxu0 0.0
        %543 = vmatpush1.msra.mxu0 0.0
        %544 = vmatprep.subr.mxu0 0.0
        %545 = vmatpush1.msra.mxu0 0.0
        %546 = vmatprep.subr.mxu0 0.0
        %547 = vmatpush1.msra.mxu0 0.0
        %548 = vmatprep.subr.mxu0 0.0
        %549 = vmatpush1.msra.mxu0 0.0
        %550 = vmatprep.subr.mxu0 0.0
        %551 = vmatpush1.msra.mxu0 0.0
        %552 = vmatprep.subr.mxu0 0.0
        %553 = vmatpush1.msra.mxu0 0.0
        %554 = vmatprep.subr.mxu0 0.0
        %555 = vmatpush1.msra.mxu0 0.0
        %556 = vmatprep.subr.mxu0 0.0
        %557 = vmatpush1.msra.mxu0 0.0
        %558 = vmatprep.subr.mxu0 0.0
        %559 = vmatpush1.msra.mxu0 0.0
        %560 = vmatprep.subr.mxu0 0.0
        %561 = vmatpush1.msra.mxu0 0.0
        %562 = vmatprep.subr.mxu0 0.0
        %563 = vmatpush1.msra.mxu0 0.0
        %564 = vmatprep.subr.mxu0 0.0
        %565 = vmatpush1.msra.mxu0 0.0
        %566 = vmatprep.subr.mxu0 0.0
        %567 = vmatpush1.msra.mxu0 0.0
        %568 = vmatprep.subr.mxu0 0.0
        %569 = vmatpush1.msra.mxu0 0.0
        %570 = vmatprep.mubr.f32.mxu0 0.0
        %571 = vmatmul.mubr.f32.gmra.mrb[0].mxu0 %v485
        %v572 = vpop.f32.mrb[0].mxu0
        %v573 = vadd.f32 %v505, %v572
        %v574 = vpop.f32.mrb[0].mxu0
        %575 = vdwg.mxu0
        %v576 = vlaneseq
        %v577 = vshrl.u32 %v576, 7
        %v578 = vsub.s32 1, %v577
        %v579 = vrot.slane %v312, %v578
        %v580 = vmax.f32 %v573, %v579
        %v581 = vlaneseq
        %v582 = vshrl.u32 %v581, 7
        %v583 = vsub.s32 2, %v582
        %v584 = vrot.slane %v312, %v583
        %v585 = vmin.f32 %v580, %v584
        %586 = vst [vmem:[%s310] sm:$0xff] %v585
        %p587 = scmp.lt.s32.totalorder %s22, 1
        %s588 = scalar_select %p587, %s22, 1
        %s589 = smul.addr %s588, 8
        %s590 = scalar_lea.vmem %s6, %s589
        // Predicated region
        $region61: #{continuous_actor_forward.1} parent=43 // pred_check
          %p591 = pneg %p171
        $region62: #{continuous_actor_forward.1} parent=43 // pred_check_branch
          %593 = sbr.rel (%p591) target = $region64
        $region63: #{continuous_actor_forward.1} parent=43 // pred_region
          _
        $region64: #{continuous_actor_forward.1} parent=43 // pred_fallthru
          _
      $region44: #{continuous_actor_forward.1} parent=5 // pred_fallthru
        _
      %p594 = scmp.le.s32.totalorder 2, %s17
      // Predicated region
      $region65: #{continuous_actor_forward.1} parent=5 // pred_check
        %p595 = pneg %p594
      $region66: #{continuous_actor_forward.1} parent=5 // pred_check_branch
        %597 = sbr.rel (%p595) target = $region68
      $region67: #{continuous_actor_forward.1} parent=5 // pred_region
        %s598 = ssub.s32 %s17, 2
        // Predicated region
        $region69: #{continuous_actor_forward.1} parent=67 // pred_check
          %p599 = pneg %p177
        $region70: #{continuous_actor_forward.1} parent=67 // pred_check_branch
          %601 = sbr.rel (%p599) target = $region72
        $region71: #{continuous_actor_forward.1} parent=67 // pred_region
          %p602 = scmp.lt.s32.totalorder %s23, 1
          %s603 = scalar_select %p602, %s23, 1
          %s604 = smul.addr %s603, 8
          %s605 = scalar_lea.vmem %s6, %s604
        $region72: #{continuous_actor_forward.1} parent=67 // pred_fallthru
          _
      $region68: #{continuous_actor_forward.1} parent=5 // pred_fallthru
        _
    $region6: #{continuous_actor_forward.1} parent=1 // loop_footer
      %s21 = sadd.s32 1, %s17
    $region7: #{continuous_actor_forward.1} parent=1 // loop_footer_branch
      %16 = sbr.rel target = $region3
    $region8: #{continuous_actor_forward.1} parent=1 // loop_exit
      _
    %606 = vsyncpa [#allocation3], 1
    %s607 = scalar_lea.sflag [#allocation3], 1
    %608 = vsyncpa %s607, 1
    %609 = vsyncpa [#allocation5], 1
    %610 = vsyncpa [#allocation8], 1

</llo_original>
